<compile_context>
chip_gen: v7x
topology: tpu7x:2x2x1
jax: 0.10.0
libtpu: 0.0.40
codegen_flags: <defaults>
</compile_context>

<pallas_src>
import functools

import jax
import jax.numpy as jnp
from jax.experimental import pallas as pl
from jax.experimental.pallas import tpu as pltpu


def _round_up(x, m):
    return (x + m - 1) // m * m


def _tpu_vmem_bytes():
    try:
        info = pltpu.get_tpu_info()
        v = getattr(info, "vmem_capacity_bytes", None)
        if v:
            return int(v)
    except Exception:
        pass
    return 64 * 1024 * 1024  # v7x-safe fallback


# ----------------------------------------------------------------------------
# Kernel 1: recurrent step (attention + embedding + context gate + LSTM stack).
# ----------------------------------------------------------------------------
def _recurrent_kernel(num_layers, hidden_pad, table_in_vmem, *refs):
    (ids_ref, h_ref, c_ref, enc_ref, penc_ref, mask_ref, emb_ref,
     w1d_ref, w2_ref, cg_w_ref, cg_b_ref) = refs[:11]
    idx = 11
    lstm_refs = []
    for _ in range(num_layers):
        lstm_refs.append((refs[idx], refs[idx + 1]))
        idx += 2
    x_out_ref, h_out_ref, c_out_ref = refs[idx], refs[idx + 1], refs[idx + 2]

    f32 = jnp.float32
    B = h_ref.shape[1]
    Hd = hidden_pad

    # ---- embedding lookup ----
    if table_in_vmem:
        # Table resident in VMEM: B dynamic row reads, no per-row DMA descriptors.
        emb = jnp.concatenate(
            [emb_ref[pl.ds(ids_ref[b], 1), :] for b in range(B)], axis=0)
        copies = None
    else:
        # Table in HBM: gather only the B needed (already-cast) rows by DMA and
        # overlap the transfers with the attention math below.
        emb_buf, emb_sem = refs[idx + 3], refs[idx + 4]
        copies = []
        for b in range(B):
            cp = pltpu.make_async_copy(
                emb_ref.at[pl.ds(ids_ref[b], 1), :],
                emb_buf.at[pl.ds(b, 1), :],
                emb_sem.at[b])
            cp.start()
            copies.append(cp)

    h_top = h_ref[num_layers - 1]                                   # (B, Hdp) f32

    # ---- attention (batch-major; enc @ W1e precomputed per sequence) ----
    w1d = w1d_ref[...]
    pdec = jnp.dot(h_top.astype(w1d.dtype), w1d,
                   preferred_element_type=f32)                      # (B, Ap)
    u = jnp.tanh(penc_ref[...] + pdec[:, None, :])                  # (B, S, Ap)
    scores = jnp.sum(u * w2_ref[...], axis=-1)                      # (B, S)
    scores = jnp.where(mask_ref[...] > 0, scores, -1e9)
    scores = scores - jnp.max(scores, axis=-1, keepdims=True)
    e = jnp.exp(scores)
    denom = jnp.sum(e, axis=-1, keepdims=True)
    alpha = e * pl.reciprocal(denom, approx=True)                   # (B, S)
    enc = enc_ref[...]
    # Batched MXU contraction over S (no (B,S,He) VPU temp).
    ctx = jnp.einsum("bqs,bsh->bqh", alpha[:, None, :].astype(enc.dtype), enc,
                     preferred_element_type=f32)[:, 0]              # (B, Hep)

    if copies is not None:
        for cp in copies:
            cp.wait()
        emb = emb_buf[...]
    emb_f = emb.astype(f32)                                         # (B, Ep)

    # ---- context gate: ONE fused matmul; concat boundaries are 128-aligned ----
    cg_w = cg_w_ref[...]
    cg_in = jnp.concatenate([h_top, emb_f, ctx], axis=1).astype(cg_w.dtype)
    z = jax.nn.sigmoid(jnp.dot(cg_in, cg_w, preferred_element_type=f32)
                       + cg_b_ref[...])
    ctx_g = z * ctx                                                 # (B, Hep)

    # ---- multi-layer LSTM cell: fused [W_ih; W_hh], gate order (i, f, o, g),
    #      every gate block padded to Hdp (128-aligned slices). ----
    x = jnp.concatenate([emb_f, ctx_g], axis=1)                     # (B, Ep+Hep)
    for layer in range(num_layers):
        w_ref, b_ref = lstm_refs[layer]
        w = w_ref[...]
        h_prev = h_ref[layer]
        c_prev = c_ref[layer]
        xin = jnp.concatenate([x, h_prev], axis=1).astype(w.dtype)
        gates = jnp.dot(xin, w, preferred_element_type=f32) + b_ref[...]
        sg = jax.nn.sigmoid(gates[:, :3 * Hd])                      # i, f, o at once
        i_g = sg[:, 0:Hd]
        f_g = sg[:, Hd:2 * Hd]
        o_g = sg[:, 2 * Hd:3 * Hd]
        g_g = jnp.tanh(gates[:, 3 * Hd:])
        c_new = f_g * c_prev + i_g * g_g
        h_new = o_g * jnp.tanh(c_new)
        h_out_ref[layer] = h_new
        c_out_ref[layer] = c_new
        x = h_new

    x_out_ref[...] = x.astype(x_out_ref.dtype)


# ----------------------------------------------------------------------------
# Kernel 2: output projection, tiled over the padded vocab.
# ----------------------------------------------------------------------------
def _projection_kernel(x_ref, w_ref, b_ref, out_ref):
    out_ref[...] = (jnp.dot(x_ref[...], w_ref[...],
                            preferred_element_type=jnp.float32) + b_ref[...])


# ----------------------------------------------------------------------------
# One-time parameter preprocessing (fusion / reorder / 128-padding / casting).
# ----------------------------------------------------------------------------
def preprocess_params(params, num_layers, mxu_dtype=jnp.bfloat16,
                      table_in_vmem=None, vmem_bytes=None):
    f32 = jnp.float32
    V, E = params["embedding"].shape
    He, A = params["attn_w1e"].shape
    Hd = params["attn_w1d"].shape[0]
    Ep, Hep, Ap, Hdp = (_round_up(d, 128) for d in (E, He, A, Hd))

    if vmem_bytes is None:
        vmem_bytes = _tpu_vmem_bytes()
    # Generation-dependent scoped-VMEM budget (v5e/v6e: 128 MiB, v7x: 64 MiB phys).
    vmem_limit = int(min(vmem_bytes * 3 // 4, 112 * 1024 * 1024))

    wb = jnp.dtype(mxu_dtype).itemsize
    # Vocab tile: double-buffered (Hdp, tile_v) weight stream must use <= ~1/3
    # of the scoped VMEM budget (smaller tiles on v7x, bigger on v5e/v6e).
    tile_v = (vmem_limit // 3) // (2 * Hdp * wb)
    tile_v = max(128, min(8192, (tile_v // 128) * 128))
    tile_v = min(tile_v, _round_up(V, 128))
    Vp = _round_up(V, tile_v)

    def pad2(w, rows, cols, dtype):
        return jnp.zeros((rows, cols), dtype).at[:w.shape[0], :w.shape[1]].set(
            w.astype(dtype))

    # Embedding table: cast/pad ONCE; keep in VMEM when small, else HBM gather.
    emb_table = pad2(params["embedding"], V, Ep, mxu_dtype)
    if table_in_vmem is None:
        table_in_vmem = (V * Ep * wb) <= 8 * 1024 * 1024

    # Attention weights.
    w1d = pad2(params["attn_w1d"], Hdp, Ap, mxu_dtype)
    w2 = jnp.zeros((1, 1, Ap), f32).at[:, :, :A].set(
        params["attn_w2"].reshape(1, 1, A).astype(f32))

    # Context gate: one fused weight over concat([h_top, emb, ctx]) (padded rows).
    cg_w = jnp.zeros((Hdp + Ep + Hep, Hep), mxu_dtype)
    cg_w = cg_w.at[:Hd, :He].set(params["cg_wh"].astype(mxu_dtype))
    cg_w = cg_w.at[Hdp:Hdp + E, :He].set(params["cg_we"].astype(mxu_dtype))
    cg_w = cg_w.at[Hdp + Ep:Hdp + Ep + He, :He].set(params["cg_wc"].astype(mxu_dtype))
    cg_b = pad2(params["cg_b"], 1, Hep, f32)

    # LSTM: fuse [W_ih; W_hh] per layer, reorder PyTorch gates (i,f,g,o)->(i,f,o,g),
    # pad every input block and every gate block to a multiple of 128.
    order = (0, 1, 3, 2)   # dest gate g reads source gate order[g]

    def fuse_lstm(w_ih, w_hh, b, in_splits):
        rows_pad = sum(p for _, p in in_splits) + Hdp
        w = jnp.zeros((rows_pad, 4 * Hdp), mxu_dtype)
        bp = jnp.zeros((1, 4 * Hdp), f32)
        row_blocks, s_off, d_off = [], 0, 0
        for orig, padp in in_splits:
            row_blocks.append((s_off, d_off, orig))
            s_off += orig
            d_off += padp
        h_off = d_off
        for g_dst in range(4):
            cs, cd = order[g_dst] * Hd, g_dst * Hdp
            for so, do, orig in row_blocks:
                w = w.at[do:do + orig, cd:cd + Hd].set(
                    w_ih[so:so + orig, cs:cs + Hd].astype(mxu_dtype))
            w = w.at[h_off:h_off + Hd, cd:cd + Hd].set(
                w_hh[:, cs:cs + Hd].astype(mxu_dtype))
            bp = bp.at[:, cd:cd + Hd].set(b[:, cs:cs + Hd].astype(f32))
        return w, bp

    lstm = []
    for l in range(num_layers):
        splits = [(E, Ep), (He, Hep)] if l == 0 else [(Hd, Hdp)]
        lstm.append(fuse_lstm(params[f"lstm_wih_{l}"], params[f"lstm_whh_{l}"],
                              params[f"lstm_b_{l}"], splits))

    # Output projection, vocab padded to a multiple of tile_v (lane-dense stores).
    # TODO(synk): for sub-bf16 projection weights use fp8 on v7x (no int8 MXU
    # there) / int8 on v5e-v6e; kept at mxu_dtype here.
    out_w = pad2(params["out_w"], Hdp, Vp, mxu_dtype)
    out_b = pad2(params["out_b"], 1, Vp, f32)

    return dict(
        dims=dict(V=V, E=E, He=He, Hd=Hd, A=A, Ep=Ep, Hep=Hep, Ap=Ap, Hdp=Hdp,
                  Vp=Vp, tile_v=tile_v, num_layers=num_layers),
        mxu_dtype=mxu_dtype, table_in_vmem=bool(table_in_vmem),
        vmem_limit=vmem_limit,
        embedding=emb_table, w1e_f32=params["attn_w1e"].astype(f32),
        w1d=w1d, w2=w2, cg_w=cg_w, cg_b=cg_b, lstm=lstm,
        out_w=out_w, out_b=out_b)


# ----------------------------------------------------------------------------
# Per-sequence (decode-step-invariant) encoder-side preprocessing.
# ----------------------------------------------------------------------------
def precompute_encoder(prep, enc_states, attention_mask):
    d = prep["dims"]
    f32 = jnp.float32
    S, B, He = enc_states.shape
    enc_b = jnp.transpose(enc_states, (1, 0, 2)).astype(f32)          # (B, S, He)
    penc = jnp.einsum("bse,ea->bsa", enc_b, prep["w1e_f32"])          # (B, S, A)
    enc_p = jnp.zeros((B, S, d["Hep"]), prep["mxu_dtype"]).at[:, :, :He].set(
        enc_b.astype(prep["mxu_dtype"]))
    penc_p = jnp.zeros((B, S, d["Ap"]), f32).at[:, :, :d["A"]].set(penc.astype(f32))
    return enc_p, penc_p, attention_mask.astype(f32)


# ----------------------------------------------------------------------------
# Single decode step.
# ----------------------------------------------------------------------------
def decoder_step(prep, enc_pre, cur_input, state_h, state_c):
    d = prep["dims"]
    f32 = jnp.float32
    L, Hd, Hdp = d["num_layers"], d["Hd"], d["Hdp"]
    B = cur_input.shape[0]
    enc_p, penc_p, mask = enc_pre

    ids = jnp.clip(cur_input.astype(jnp.int32), 0, d["V"] - 1)   # guard the gather
    h = jnp.zeros((L, B, Hdp), f32).at[:, :, :Hd].set(state_h.astype(f32))
    c = jnp.zeros((L, B, Hdp), f32).at[:, :, :Hd].set(state_c.astype(f32))

    lstm_flat = []
    for w, b in prep["lstm"]:
        lstm_flat += [w, b]
    inputs = [ids, h, c, enc_p, penc_p, mask, prep["embedding"], prep["w1d"],
              prep["w2"], prep["cg_w"], prep["cg_b"], *lstm_flat]

    vmem = lambda: pl.BlockSpec(memory_space=pltpu.MemorySpace.VMEM)
    emb_spec = (vmem() if prep["table_in_vmem"]
                else pl.BlockSpec(memory_space=pl.ANY))
    in_specs = ([pl.BlockSpec(memory_space=pltpu.MemorySpace.SMEM),   # ids
                 vmem(), vmem(), vmem(), vmem(), vmem(), emb_spec]
                + [vmem() for _ in inputs[7:]])
    scratch = ([] if prep["table_in_vmem"]
               else [pltpu.VMEM((B, d["Ep"]), prep["mxu_dtype"]),
                     pltpu.SemaphoreType.DMA((B,))])
    # TODO(synk): at Hd ~ 1024+ on v7x, keep the fused LSTM weights in HBM
    # (pl.ANY) and prefetch layer l+1's weight during layer l's matmul.

    x_top, new_h, new_c = pl.pallas_call(
        functools.partial(_recurrent_kernel, L, Hdp, prep["table_in_vmem"]),
        out_shape=(jax.ShapeDtypeStruct((B, Hdp), prep["mxu_dtype"]),
                   jax.ShapeDtypeStruct((L, B, Hdp), f32),
                   jax.ShapeDtypeStruct((L, B, Hdp), f32)),
        in_specs=in_specs,
        out_specs=(vmem(), vmem(), vmem()),
        scratch_shapes=scratch,
        compiler_params=pltpu.CompilerParams(vmem_limit_bytes=prep["vmem_limit"]),
    )(*inputs)

    # Output projection: tiled over the padded vocab so the weight stream
    # double-buffers behind the MXU; "parallel" lets v7x split tiles across TCs.
    tv, Vp = d["tile_v"], d["Vp"]
    logits_p = pl.pallas_call(
        _projection_kernel,
        out_shape=jax.ShapeDtypeStruct((B, Vp), f32),
        grid=(Vp // tv,),
        in_specs=[pl.BlockSpec((B, Hdp), lambda j: (0, 0)),
                  pl.BlockSpec((Hdp, tv), lambda j: (0, j)),
                  pl.BlockSpec((1, tv), lambda j: (0, j))],
        out_specs=pl.BlockSpec((B, tv), lambda j: (0, j)),
        compiler_params=pltpu.CompilerParams(
            dimension_semantics=("parallel",),
            vmem_limit_bytes=prep["vmem_limit"]),
    )(x_top, prep["out_w"], prep["out_b"])

    return logits_p[:, :d["V"]], (new_h[:, :, :Hd], new_c[:, :, :Hd])


# ----------------------------------------------------------------------------
# Pure-JAX reference (same math, unfused/unpadded weights) for correctness.
# ----------------------------------------------------------------------------
def decoder_reference(params, num_layers, cur_input, state_h, state_c,
                      enc_states, attention_mask):
    S, B, He = enc_states.shape
    L, _, Hd = state_h.shape
    h_top = state_h[num_layers - 1]
    proj = jnp.einsum("sbe,ea->sba", enc_states, params["attn_w1e"]) \
         + jnp.dot(h_top, params["attn_w1d"])[None]
    u = jnp.tanh(proj)
    scores = jnp.sum(u * params["attn_w2"][None], axis=-1)               # (S, B)
    scores = jnp.where(attention_mask.T > 0, scores, -1e9)
    alpha = jax.nn.softmax(scores, axis=0)
    ctx = jnp.sum(alpha[:, :, None] * enc_states, axis=0)
    emb = params["embedding"][cur_input]
    z = jax.nn.sigmoid(jnp.dot(h_top, params["cg_wh"])
                       + jnp.dot(emb, params["cg_we"])
                       + jnp.dot(ctx, params["cg_wc"]) + params["cg_b"])
    ctx_g = z * ctx
    x = jnp.concatenate([emb, ctx_g], axis=1)
    new_h, new_c = [], []
    for l in range(num_layers):
        gates = (jnp.dot(x, params[f"lstm_wih_{l}"])
                 + jnp.dot(state_h[l], params[f"lstm_whh_{l}"])
                 + params[f"lstm_b_{l}"])
        i_g = jax.nn.sigmoid(gates[:, 0:Hd])
        f_g = jax.nn.sigmoid(gates[:, Hd:2 * Hd])
        g_g = jnp.tanh(gates[:, 2 * Hd:3 * Hd])
        o_g = jax.nn.sigmoid(gates[:, 3 * Hd:4 * Hd])
        c_new = f_g * state_c[l] + i_g * g_g
        h_new = o_g * jnp.tanh(c_new)
        new_h.append(h_new)
        new_c.append(c_new)
        x = h_new
    out = jnp.dot(x, params["out_w"]) + params["out_b"]
    return out, (jnp.stack(new_h), jnp.stack(new_c))


def init_params(key, vocab, embed, en_hid, de_hid, attn, num_layers):
    ks = iter(jax.random.split(key, 32))
    mk = lambda shape: jax.random.normal(next(ks), shape, jnp.float32) * 0.1
    p = {
        "embedding": mk((vocab, embed)),
        # attention_model: Linear(He+Hd -> A, no bias) split enc/dec, Linear(A -> 1, no bias)
        "attn_w1e": mk((en_hid, attn)),
        "attn_w1d": mk((de_hid, attn)),
        "attn_w2":  mk((1, attn)),
        # context_gate: Linear(Hd + E + He -> He) + sigmoid, split into three parts
        "cg_wh": mk((de_hid, en_hid)),
        "cg_we": mk((embed, en_hid)),
        "cg_wc": mk((en_hid, en_hid)),
        "cg_b":  mk((1, en_hid)),
        # nn.Linear(de_hid -> vocab), pre-transposed to (in, out)
        "out_w": mk((de_hid, vocab)),
        "out_b": mk((1, vocab)),
    }
    for l in range(num_layers):
        in_size = embed + en_hid if l == 0 else de_hid
        p[f"lstm_wih_{l}"] = mk((in_size, 4 * de_hid))
        p[f"lstm_whh_{l}"] = mk((de_hid, 4 * de_hid))
        p[f"lstm_b_{l}"]   = mk((1, 4 * de_hid))   # b_ih + b_hh folded into one bias
    return p


if __name__ == "__main__":
    VOCAB, EMBED, EN_HID, DE_HID, ATTN = 32, 16, 16, 16, 16
    NUM_LAYERS = 2
    B, S = 8, 8   # B a multiple of 8 fills vreg sublanes / MXU rows

    key = jax.random.PRNGKey(0)
    kp, k1, k2, k3, k4 = jax.random.split(key, 5)
    params = init_params(kp, VOCAB, EMBED, EN_HID, DE_HID, ATTN, NUM_LAYERS)

    cur_input = jax.random.randint(k1, (B,), 0, VOCAB, dtype=jnp.int32)
    state_h = jax.random.normal(k2, (NUM_LAYERS, B, DE_HID), jnp.float32) * 0.5
    state_c = jax.random.normal(k3, (NUM_LAYERS, B, DE_HID), jnp.float32) * 0.5
    enc_states = jax.random.normal(k4, (S, B, EN_HID), jnp.float32)
    lengths = jnp.array([8, 5, 8, 3, 6, 8, 2, 7], dtype=jnp.int32)
    attention_mask = (jnp.arange(S)[None, :] < lengths[:, None]).astype(jnp.float32)

    ref_out, (ref_h, ref_c) = decoder_reference(params, NUM_LAYERS, cur_input,
                                                state_h, state_c, enc_states,
                                                attention_mask)

    # ---- f32 MXU path: tight tolerance (only approximation is the EUP
    #      approx reciprocal in the softmax denominator). ----
    prep32 = preprocess_params(params, NUM_LAYERS, mxu_dtype=jnp.float32)
    enc_pre32 = precompute_encoder(prep32, enc_states, attention_mask)
    out, (new_h, new_c) = decoder_step(prep32, enc_pre32, cur_input,
                                       state_h, state_c)
    jax.block_until_ready((out, new_h, new_c))
    assert out.shape == (B, VOCAB)
    assert new_h.shape == (NUM_LAYERS, B, DE_HID)
    assert new_c.shape == (NUM_LAYERS, B, DE_HID)
    assert jnp.allclose(out, ref_out, atol=5e-3), "output mismatch (f32)"
    assert jnp.allclose(new_h, ref_h, atol=5e-3), "hidden state mismatch (f32)"
    assert jnp.allclose(new_c, ref_c, atol=5e-3), "cell state mismatch (f32)"

    # ---- default bf16 MXU path (fast path on v5e/v6e/v7x), f32 accumulation ----
    prep16 = preprocess_params(params, NUM_LAYERS)          # bf16 default
    enc_pre16 = precompute_encoder(prep16, enc_states, attention_mask)
    out16, (nh16, nc16) = decoder_step(prep16, enc_pre16, cur_input,
                                       state_h, state_c)
    jax.block_until_ready((out16, nh16, nc16))
    assert jnp.allclose(out16, ref_out, atol=5e-2), "output mismatch (bf16)"
    assert jnp.allclose(nh16, ref_h, atol=5e-2), "hidden state mismatch (bf16)"
    assert jnp.allclose(nc16, ref_c, atol=5e-2), "cell state mismatch (bf16)"

    # ---- bf16 + HBM-resident embedding table (exercises the DMA-gather path) ----
    prep_hbm = preprocess_params(params, NUM_LAYERS, table_in_vmem=False)
    enc_pre_h = precompute_encoder(prep_hbm, enc_states, attention_mask)
    outh, (nhh, nch) = decoder_step(prep_hbm, enc_pre_h, cur_input,
                                    state_h, state_c)
    jax.block_until_ready((outh, nhh, nch))
    assert jnp.allclose(outh, ref_out, atol=5e-2), "output mismatch (bf16/hbm)"
    assert jnp.allclose(nhh, ref_h, atol=5e-2), "hidden state mismatch (bf16/hbm)"
    assert jnp.allclose(nch, ref_c, atol=5e-2), "cell state mismatch (bf16/hbm)"

    print("KERNEL_OK")
</pallas_src>

<mosaic_0001>
module attributes {stable_mosaic.version = 11 : i64} {
  func.func @_recurrent_kernel(%arg0: memref<8xi32, #tpu.memory_space<smem>>, %arg1: memref<2x8x128xf32, #tpu.memory_space<vmem>>, %arg2: memref<2x8x128xf32, #tpu.memory_space<vmem>>, %arg3: memref<8x8x128xf32, #tpu.memory_space<vmem>>, %arg4: memref<8x8x128xf32, #tpu.memory_space<vmem>>, %arg5: memref<8x8xf32, #tpu.memory_space<vmem>>, %arg6: memref<32x128xf32, #tpu.memory_space<vmem>>, %arg7: memref<128x128xf32, #tpu.memory_space<vmem>>, %arg8: memref<1x1x128xf32, #tpu.memory_space<vmem>>, %arg9: memref<384x128xf32, #tpu.memory_space<vmem>>, %arg10: memref<1x128xf32, #tpu.memory_space<vmem>>, %arg11: memref<384x512xf32, #tpu.memory_space<vmem>>, %arg12: memref<1x512xf32, #tpu.memory_space<vmem>>, %arg13: memref<256x512xf32, #tpu.memory_space<vmem>>, %arg14: memref<1x512xf32, #tpu.memory_space<vmem>>, %arg15: memref<8x128xf32, #tpu.memory_space<vmem>>, %arg16: memref<2x8x128xf32, #tpu.memory_space<vmem>>, %arg17: memref<2x8x128xf32, #tpu.memory_space<vmem>>) attributes {dimension_semantics = [], scalar_prefetch = 0 : i64, scratch_operands = 0 : i64, tpu.core_type = #tpu.core_type<tc>} {
    %c0 = arith.constant 0 : index
    %0 = memref.load %arg0[%c0] : memref<8xi32, #tpu.memory_space<smem>>
    %1 = arith.index_cast %0 : i32 to index
    %c0_0 = arith.constant 0 : index
    %2 = vector.load %arg6[%1, %c0_0] : memref<32x128xf32, #tpu.memory_space<vmem>>, vector<1x128xf32>
    %c1 = arith.constant 1 : index
    %3 = memref.load %arg0[%c1] : memref<8xi32, #tpu.memory_space<smem>>
    %4 = arith.index_cast %3 : i32 to index
    %c0_1 = arith.constant 0 : index
    %5 = vector.load %arg6[%4, %c0_1] : memref<32x128xf32, #tpu.memory_space<vmem>>, vector<1x128xf32>
    %c2 = arith.constant 2 : index
    %6 = memref.load %arg0[%c2] : memref<8xi32, #tpu.memory_space<smem>>
    %7 = arith.index_cast %6 : i32 to index
    %c0_2 = arith.constant 0 : index
    %8 = vector.load %arg6[%7, %c0_2] : memref<32x128xf32, #tpu.memory_space<vmem>>, vector<1x128xf32>
    %c3 = arith.constant 3 : index
    %9 = memref.load %arg0[%c3] : memref<8xi32, #tpu.memory_space<smem>>
    %10 = arith.index_cast %9 : i32 to index
    %c0_3 = arith.constant 0 : index
    %11 = vector.load %arg6[%10, %c0_3] : memref<32x128xf32, #tpu.memory_space<vmem>>, vector<1x128xf32>
    %c4 = arith.constant 4 : index
    %12 = memref.load %arg0[%c4] : memref<8xi32, #tpu.memory_space<smem>>
    %13 = arith.index_cast %12 : i32 to index
    %c0_4 = arith.constant 0 : index
    %14 = vector.load %arg6[%13, %c0_4] : memref<32x128xf32, #tpu.memory_space<vmem>>, vector<1x128xf32>
    %c5 = arith.constant 5 : index
    %15 = memref.load %arg0[%c5] : memref<8xi32, #tpu.memory_space<smem>>
    %16 = arith.index_cast %15 : i32 to index
    %c0_5 = arith.constant 0 : index
    %17 = vector.load %arg6[%16, %c0_5] : memref<32x128xf32, #tpu.memory_space<vmem>>, vector<1x128xf32>
    %c6 = arith.constant 6 : index
    %18 = memref.load %arg0[%c6] : memref<8xi32, #tpu.memory_space<smem>>
    %19 = arith.index_cast %18 : i32 to index
    %c0_6 = arith.constant 0 : index
    %20 = vector.load %arg6[%19, %c0_6] : memref<32x128xf32, #tpu.memory_space<vmem>>, vector<1x128xf32>
    %c7 = arith.constant 7 : index
    %21 = memref.load %arg0[%c7] : memref<8xi32, #tpu.memory_space<smem>>
    %22 = arith.index_cast %21 : i32 to index
    %c0_7 = arith.constant 0 : index
    %23 = vector.load %arg6[%22, %c0_7] : memref<32x128xf32, #tpu.memory_space<vmem>>, vector<1x128xf32>
    %24 = tpu.concatenate %2, %5, %8, %11, %14, %17, %20, %23 in 0 : vector<1x128xf32>, vector<1x128xf32>, vector<1x128xf32>, vector<1x128xf32>, vector<1x128xf32>, vector<1x128xf32>, vector<1x128xf32>, vector<1x128xf32> -> vector<8x128xf32>
    %c1_8 = arith.constant 1 : index
    %c0_9 = arith.constant 0 : index
    %c0_10 = arith.constant 0 : index
    %25 = vector.load %arg1[%c1_8, %c0_9, %c0_10] : memref<2x8x128xf32, #tpu.memory_space<vmem>>, vector<1x8x128xf32>
    %26 = vector.shape_cast %25 : vector<1x8x128xf32> to vector<8x128xf32>
    %c0_11 = arith.constant 0 : index
    %c0_12 = arith.constant 0 : index
    %27 = vector.load %arg7[%c0_11, %c0_12] : memref<128x128xf32, #tpu.memory_space<vmem>>, vector<128x128xf32>
    %cst = arith.constant dense<0.000000e+00> : vector<8x128xf32>
    %28 = tpu.matmul %26, %27, %cst {dimension_numbers = #tpu.dot_dimension_numbers<[1], [0], [0], [1], [0, 0, 1, 1], [], []>} : vector<8x128xf32>, vector<128x128xf32>, vector<8x128xf32> -> vector<8x128xf32>
    %c0_13 = arith.constant 0 : index
    %c0_14 = arith.constant 0 : index
    %c0_15 = arith.constant 0 : index
    %29 = vector.load %arg4[%c0_13, %c0_14, %c0_15] : memref<8x8x128xf32, #tpu.memory_space<vmem>>, vector<8x8x128xf32>
    %30 = vector.shape_cast %28 : vector<8x128xf32> to vector<8x1x128xf32>
    %31 = vector.broadcast %30 : vector<8x1x128xf32> to vector<8x8x128xf32>
    %32 = arith.addf %29, %31 : vector<8x8x128xf32>
    %33 = math.tanh %32 : vector<8x8x128xf32>
    %c0_16 = arith.constant 0 : index
    %c0_17 = arith.constant 0 : index
    %c0_18 = arith.constant 0 : index
    %34 = vector.load %arg8[%c0_16, %c0_17, %c0_18] : memref<1x1x128xf32, #tpu.memory_space<vmem>>, vector<1x1x128xf32>
    %35 = vector.broadcast %34 : vector<1x1x128xf32> to vector<8x8x128xf32>
    %36 = arith.mulf %33, %35 : vector<8x8x128xf32>
    %cst_19 = arith.constant dense<0.000000e+00> : vector<8x8xf32>
    %37 = vector.multi_reduction <add>, %36, %cst_19 [2] : vector<8x8x128xf32> to vector<8x8xf32>
    %c0_20 = arith.constant 0 : index
    %c0_21 = arith.constant 0 : index
    %38 = vector.load %arg5[%c0_20, %c0_21] : memref<8x8xf32, #tpu.memory_space<vmem>>, vector<8x8xf32>
    %cst_22 = arith.constant 0.000000e+00 : f32
    %39 = vector.broadcast %cst_22 : f32 to vector<8x8xf32>
    %40 = arith.cmpf ogt, %38, %39 : vector<8x8xf32>
    %cst_23 = arith.constant -1.000000e+09 : f32
    %41 = vector.broadcast %cst_23 : f32 to vector<8x8xf32>
    %42 = arith.select %40, %37, %41 : vector<8x8xi1>, vector<8x8xf32>
    %cst_24 = arith.constant dense<0xFF800000> : vector<8xf32>
    %43 = vector.multi_reduction <maximumf>, %42, %cst_24 [1] : vector<8x8xf32> to vector<8xf32>
    %44 = vector.shape_cast %43 : vector<8xf32> to vector<8x1xf32>
    %45 = vector.broadcast %44 : vector<8x1xf32> to vector<8x8xf32>
    %46 = arith.subf %42, %45 : vector<8x8xf32>
    %47 = math.exp %46 : vector<8x8xf32>
    %cst_25 = arith.constant dense<0.000000e+00> : vector<8xf32>
    %48 = vector.multi_reduction <add>, %47, %cst_25 [1] : vector<8x8xf32> to vector<8xf32>
    %49 = vector.shape_cast %48 : vector<8xf32> to vector<8x1xf32>
    %50 = tpu.reciprocal %49 {approx = true} : vector<8x1xf32> -> vector<8x1xf32>
    %51 = vector.broadcast %50 : vector<8x1xf32> to vector<8x8xf32>
    %52 = arith.mulf %47, %51 : vector<8x8xf32>
    %c0_26 = arith.constant 0 : index
    %c0_27 = arith.constant 0 : index
    %c0_28 = arith.constant 0 : index
    %53 = vector.load %arg3[%c0_26, %c0_27, %c0_28] : memref<8x8x128xf32, #tpu.memory_space<vmem>>, vector<8x8x128xf32>
    %54 = vector.shape_cast %52 : vector<8x8xf32> to vector<8x1x8xf32>
    "tpu.trace_start"() <{level = 10 : i32, message = "bqs,bsh->bqh"}> : () -> ()
    %cst_29 = arith.constant dense<0.000000e+00> : vector<8x1x128xf32>
    %55 = tpu.matmul %54, %53, %cst_29 {dimension_numbers = #tpu.dot_dimension_numbers<[2], [1], [1], [2], [0, 0, 0, 1, 1, 2], [0], [0]>} : vector<8x1x8xf32>, vector<8x8x128xf32>, vector<8x1x128xf32> -> vector<8x1x128xf32>
    "tpu.trace_stop"() : () -> ()
    %56 = vector.shape_cast %55 : vector<8x1x128xf32> to vector<8x128xf32>
    %c0_30 = arith.constant 0 : index
    %c0_31 = arith.constant 0 : index
    %57 = vector.load %arg9[%c0_30, %c0_31] : memref<384x128xf32, #tpu.memory_space<vmem>>, vector<384x128xf32>
    %58 = tpu.concatenate %26, %24, %56 in 1 : vector<8x128xf32>, vector<8x128xf32>, vector<8x128xf32> -> vector<8x384xf32>
    %cst_32 = arith.constant dense<0.000000e+00> : vector<8x128xf32>
    %59 = tpu.matmul %58, %57, %cst_32 {dimension_numbers = #tpu.dot_dimension_numbers<[1], [0], [0], [1], [0, 0, 1, 1], [], []>} : vector<8x384xf32>, vector<384x128xf32>, vector<8x128xf32> -> vector<8x128xf32>
    %c0_33 = arith.constant 0 : index
    %c0_34 = arith.constant 0 : index
    %60 = vector.load %arg10[%c0_33, %c0_34] : memref<1x128xf32, #tpu.memory_space<vmem>>, vector<1x128xf32>
    %61 = vector.broadcast %60 : vector<1x128xf32> to vector<8x128xf32>
    %62 = arith.addf %59, %61 : vector<8x128xf32>
    %63 = arith.negf %62 : vector<8x128xf32>
    %64 = math.exp %63 : vector<8x128xf32>
    %cst_35 = arith.constant 1.000000e+00 : f32
    %65 = vector.broadcast %cst_35 : f32 to vector<8x128xf32>
    %66 = arith.addf %65, %64 : vector<8x128xf32>
    %67 = arith.divf %65, %66 : vector<8x128xf32>
    %68 = arith.mulf %67, %56 : vector<8x128xf32>
    %69 = tpu.concatenate %24, %68 in 1 : vector<8x128xf32>, vector<8x128xf32> -> vector<8x256xf32>
    %c0_36 = arith.constant 0 : index
    %c0_37 = arith.constant 0 : index
    %70 = vector.load %arg11[%c0_36, %c0_37] : memref<384x512xf32, #tpu.memory_space<vmem>>, vector<384x512xf32>
    %c0_38 = arith.constant 0 : index
    %c0_39 = arith.constant 0 : index
    %c0_40 = arith.constant 0 : index
    %71 = vector.load %arg1[%c0_38, %c0_39, %c0_40] : memref<2x8x128xf32, #tpu.memory_space<vmem>>, vector<1x8x128xf32>
    %72 = vector.shape_cast %71 : vector<1x8x128xf32> to vector<8x128xf32>
    %c0_41 = arith.constant 0 : index
    %c0_42 = arith.constant 0 : index
    %c0_43 = arith.constant 0 : index
    %73 = vector.load %arg2[%c0_41, %c0_42, %c0_43] : memref<2x8x128xf32, #tpu.memory_space<vmem>>, vector<1x8x128xf32>
    %74 = vector.shape_cast %73 : vector<1x8x128xf32> to vector<8x128xf32>
    %75 = tpu.concatenate %69, %72 in 1 : vector<8x256xf32>, vector<8x128xf32> -> vector<8x384xf32>
    %cst_44 = arith.constant dense<0.000000e+00> : vector<8x512xf32>
    %76 = tpu.matmul %75, %70, %cst_44 {dimension_numbers = #tpu.dot_dimension_numbers<[1], [0], [0], [1], [0, 0, 1, 1], [], []>} : vector<8x384xf32>, vector<384x512xf32>, vector<8x512xf32> -> vector<8x512xf32>
    %c0_45 = arith.constant 0 : index
    %c0_46 = arith.constant 0 : index
    %77 = vector.load %arg12[%c0_45, %c0_46] : memref<1x512xf32, #tpu.memory_space<vmem>>, vector<1x512xf32>
    %78 = vector.broadcast %77 : vector<1x512xf32> to vector<8x512xf32>
    %79 = arith.addf %76, %78 : vector<8x512xf32>
    %80 = vector.extract_strided_slice %79 {offsets = [0, 0], sizes = [8, 384], strides = [1, 1]} : vector<8x512xf32> to vector<8x384xf32>
    %81 = arith.negf %80 : vector<8x384xf32>
    %82 = math.exp %81 : vector<8x384xf32>
    %cst_47 = arith.constant 1.000000e+00 : f32
    %83 = vector.broadcast %cst_47 : f32 to vector<8x384xf32>
    %84 = arith.addf %83, %82 : vector<8x384xf32>
    %85 = arith.divf %83, %84 : vector<8x384xf32>
    %86 = vector.extract_strided_slice %85 {offsets = [0, 0], sizes = [8, 128], strides = [1, 1]} : vector<8x384xf32> to vector<8x128xf32>
    %87 = vector.extract_strided_slice %85 {offsets = [0, 128], sizes = [8, 128], strides = [1, 1]} : vector<8x384xf32> to vector<8x128xf32>
    %88 = vector.extract_strided_slice %85 {offsets = [0, 256], sizes = [8, 128], strides = [1, 1]} : vector<8x384xf32> to vector<8x128xf32>
    %89 = vector.extract_strided_slice %79 {offsets = [0, 384], sizes = [8, 128], strides = [1, 1]} : vector<8x512xf32> to vector<8x128xf32>
    %90 = math.tanh %89 : vector<8x128xf32>
    %91 = arith.mulf %87, %74 : vector<8x128xf32>
    %92 = arith.mulf %86, %90 : vector<8x128xf32>
    %93 = arith.addf %91, %92 : vector<8x128xf32>
    %94 = math.tanh %93 : vector<8x128xf32>
    %95 = arith.mulf %88, %94 : vector<8x128xf32>
    %c0_48 = arith.constant 0 : index
    %c0_49 = arith.constant 0 : index
    %c0_50 = arith.constant 0 : index
    %96 = vector.load %arg16[%c0_48, %c0_49, %c0_50] : memref<2x8x128xf32, #tpu.memory_space<vmem>>, vector<1x8x128xf32>
    %97 = vector.shape_cast %96 : vector<1x8x128xf32> to vector<8x128xf32>
    %98 = vector.shape_cast %95 : vector<8x128xf32> to vector<1x8x128xf32>
    tpu.vector_store %arg16[%c0_48, %c0_49, %c0_50], %98 {strides = array<i32>} : memref<2x8x128xf32, #tpu.memory_space<vmem>>, vector<1x8x128xf32>,
    %c0_51 = arith.constant 0 : index
    %c0_52 = arith.constant 0 : index
    %c0_53 = arith.constant 0 : index
    %99 = vector.load %arg17[%c0_51, %c0_52, %c0_53] : memref<2x8x128xf32, #tpu.memory_space<vmem>>, vector<1x8x128xf32>
    %100 = vector.shape_cast %99 : vector<1x8x128xf32> to vector<8x128xf32>
    %101 = vector.shape_cast %93 : vector<8x128xf32> to vector<1x8x128xf32>
    tpu.vector_store %arg17[%c0_51, %c0_52, %c0_53], %101 {strides = array<i32>} : memref<2x8x128xf32, #tpu.memory_space<vmem>>, vector<1x8x128xf32>,
    %c0_54 = arith.constant 0 : index
    %c0_55 = arith.constant 0 : index
    %102 = vector.load %arg13[%c0_54, %c0_55] : memref<256x512xf32, #tpu.memory_space<vmem>>, vector<256x512xf32>
    %c1_56 = arith.constant 1 : index
    %c0_57 = arith.constant 0 : index
    %c0_58 = arith.constant 0 : index
    %103 = vector.load %arg1[%c1_56, %c0_57, %c0_58] : memref<2x8x128xf32, #tpu.memory_space<vmem>>, vector<1x8x128xf32>
    %104 = vector.shape_cast %103 : vector<1x8x128xf32> to vector<8x128xf32>
    %c1_59 = arith.constant 1 : index
    %c0_60 = arith.constant 0 : index
    %c0_61 = arith.constant 0 : index
    %105 = vector.load %arg2[%c1_59, %c0_60, %c0_61] : memref<2x8x128xf32, #tpu.memory_space<vmem>>, vector<1x8x128xf32>
    %106 = vector.shape_cast %105 : vector<1x8x128xf32> to vector<8x128xf32>
    %107 = tpu.concatenate %95, %104 in 1 : vector<8x128xf32>, vector<8x128xf32> -> vector<8x256xf32>
    %cst_62 = arith.constant dense<0.000000e+00> : vector<8x512xf32>
    %108 = tpu.matmul %107, %102, %cst_62 {dimension_numbers = #tpu.dot_dimension_numbers<[1], [0], [0], [1], [0, 0, 1, 1], [], []>} : vector<8x256xf32>, vector<256x512xf32>, vector<8x512xf32> -> vector<8x512xf32>
    %c0_63 = arith.constant 0 : index
    %c0_64 = arith.constant 0 : index
    %109 = vector.load %arg14[%c0_63, %c0_64] : memref<1x512xf32, #tpu.memory_space<vmem>>, vector<1x512xf32>
    %110 = vector.broadcast %109 : vector<1x512xf32> to vector<8x512xf32>
    %111 = arith.addf %108, %110 : vector<8x512xf32>
    %112 = vector.extract_strided_slice %111 {offsets = [0, 0], sizes = [8, 384], strides = [1, 1]} : vector<8x512xf32> to vector<8x384xf32>
    %113 = arith.negf %112 : vector<8x384xf32>
    %114 = math.exp %113 : vector<8x384xf32>
    %cst_65 = arith.constant 1.000000e+00 : f32
    %115 = vector.broadcast %cst_65 : f32 to vector<8x384xf32>
    %116 = arith.addf %115, %114 : vector<8x384xf32>
    %117 = arith.divf %115, %116 : vector<8x384xf32>
    %118 = vector.extract_strided_slice %117 {offsets = [0, 0], sizes = [8, 128], strides = [1, 1]} : vector<8x384xf32> to vector<8x128xf32>
    %119 = vector.extract_strided_slice %117 {offsets = [0, 128], sizes = [8, 128], strides = [1, 1]} : vector<8x384xf32> to vector<8x128xf32>
    %120 = vector.extract_strided_slice %117 {offsets = [0, 256], sizes = [8, 128], strides = [1, 1]} : vector<8x384xf32> to vector<8x128xf32>
    %121 = vector.extract_strided_slice %111 {offsets = [0, 384], sizes = [8, 128], strides = [1, 1]} : vector<8x512xf32> to vector<8x128xf32>
    %122 = math.tanh %121 : vector<8x128xf32>
    %123 = arith.mulf %119, %106 : vector<8x128xf32>
    %124 = arith.mulf %118, %122 : vector<8x128xf32>
    %125 = arith.addf %123, %124 : vector<8x128xf32>
    %126 = math.tanh %125 : vector<8x128xf32>
    %127 = arith.mulf %120, %126 : vector<8x128xf32>
    %c1_66 = arith.constant 1 : index
    %c0_67 = arith.constant 0 : index
    %c0_68 = arith.constant 0 : index
    %128 = vector.load %arg16[%c1_66, %c0_67, %c0_68] : memref<2x8x128xf32, #tpu.memory_space<vmem>>, vector<1x8x128xf32>
    %129 = vector.shape_cast %128 : vector<1x8x128xf32> to vector<8x128xf32>
    %130 = vector.shape_cast %127 : vector<8x128xf32> to vector<1x8x128xf32>
    tpu.vector_store %arg16[%c1_66, %c0_67, %c0_68], %130 {strides = array<i32>} : memref<2x8x128xf32, #tpu.memory_space<vmem>>, vector<1x8x128xf32>,
    %c1_69 = arith.constant 1 : index
    %c0_70 = arith.constant 0 : index
    %c0_71 = arith.constant 0 : index
    %131 = vector.load %arg17[%c1_69, %c0_70, %c0_71] : memref<2x8x128xf32, #tpu.memory_space<vmem>>, vector<1x8x128xf32>
    %132 = vector.shape_cast %131 : vector<1x8x128xf32> to vector<8x128xf32>
    %133 = vector.shape_cast %125 : vector<8x128xf32> to vector<1x8x128xf32>
    tpu.vector_store %arg17[%c1_69, %c0_70, %c0_71], %133 {strides = array<i32>} : memref<2x8x128xf32, #tpu.memory_space<vmem>>, vector<1x8x128xf32>,
    %c0_72 = arith.constant 0 : index
    %c0_73 = arith.constant 0 : index
    %134 = vector.load %arg15[%c0_72, %c0_73] : memref<8x128xf32, #tpu.memory_space<vmem>>, vector<8x128xf32>
    tpu.vector_store %arg15[%c0_72, %c0_73], %127 {strides = array<i32>} : memref<8x128xf32, #tpu.memory_space<vmem>>, vector<8x128xf32>,
    return
  }
}

</mosaic_0001>

<llo_original>
// kernel: tpu_custom_call.1
$region0: #{tpu_custom_call.1}
  #allocation0 [shape = 'u32[]', space=smem, size = 0x4, offset = 0x4, fixed_abs, tag = 'smem constant byte address 0x4 - core index']
  #allocation1 [shape = 'u32[144,128]{1,0:T(1,128)}', space=vmem, size = 0x12000, scoped, tag = 'internal scratch']
  %s0 = inlined_call_operand.hbm [shape: s32[8], index: 0, kind: input, shape index: {}]
  %s1 = inlined_call_operand.hbm [shape: f32[2,8,128], index: 1, kind: input, shape index: {}]
  %s2 = inlined_call_operand.hbm [shape: f32[2,8,128], index: 2, kind: input, shape index: {}]
  %s3 = inlined_call_operand.hbm [shape: f32[8,8,128], index: 3, kind: input, shape index: {}]
  %s4 = inlined_call_operand.hbm [shape: f32[8,8,128], index: 4, kind: input, shape index: {}]
  %s5 = inlined_call_operand.vmem [shape: f32[8,8], index: 5, kind: input, shape index: {}]
  %s6 = inlined_call_operand.hbm [shape: f32[32,128], index: 6, kind: input, shape index: {}]
  %s7 = inlined_call_operand.hbm [shape: f32[128,128], index: 7, kind: input, shape index: {}]
  %s8 = inlined_call_operand.vmem [shape: f32[1,1,128], index: 8, kind: input, shape index: {}]
  %s9 = inlined_call_operand.hbm [shape: f32[384,128], index: 9, kind: input, shape index: {}]
  %s10 = inlined_call_operand.vmem [shape: f32[1,128], index: 10, kind: input, shape index: {}]
  %s11 = inlined_call_operand.hbm [shape: f32[384,512], index: 11, kind: input, shape index: {}]
  %s12 = inlined_call_operand.vmem [shape: f32[1,512], index: 12, kind: input, shape index: {}]
  %s13 = inlined_call_operand.hbm [shape: f32[256,512], index: 13, kind: input, shape index: {}]
  %s14 = inlined_call_operand.vmem [shape: f32[1,512], index: 14, kind: input, shape index: {}]
  %s15 = inlined_call_operand.hbm [shape: f32[8,128], index: 15, kind: output, shape index: {0}]
  %s16 = inlined_call_operand.hbm [shape: f32[2,8,128], index: 16, kind: output, shape index: {1}]
  %s17 = inlined_call_operand.hbm [shape: f32[2,8,128], index: 17, kind: output, shape index: {2}]
  %18 = xla_tuple %s15, %s16, %s17
  %s19 = sld [smem:[#allocation0]]
  $region126: #{tpu_custom_call.1} parent=0
    _
  %s21 = ssub.s32 1, %s19
  %s22 = scalar_select 0, %s21, %s19
  $region1: #{tpu_custom_call.1} parent=0
    #allocation2 [shape = 'u8[512]{0}', space=smem, size = 0x200, scoped, tag = 'input window, operand 0, single buffered']
    #allocation3 [shape = 's32[1]{0}', space=sflag, size = 0x4, scoped, tag = 'scoped memory for tpu_custom_call.1']
    #allocation4 [shape = 's32[1]{0}', space=sflag, size = 0x4, scoped, tag = 'scoped memory for tpu_custom_call.1']
    #allocation5 [shape = 's32[1]{0}', space=sflag, size = 0x4, scoped, tag = 'scoped memory for tpu_custom_call.1']
    #allocation6 [shape = 'u8[8192]{0}', space=vmem, size = 0x2000, scoped, tag = 'input window, operand 1, single buffered']
    #allocation7 [shape = 'u8[8192]{0}', space=vmem, size = 0x2000, scoped, tag = 'input window, operand 2, single buffered']
    #allocation8 [shape = 's32[1]{0}', space=sflag, size = 0x4, scoped, tag = 'scoped memory for tpu_custom_call.1']
    #allocation9 [shape = 'u8[32768]{0}', space=vmem, size = 0x8000, scoped, tag = 'input window, operand 3, single buffered']
    #allocation10 [shape = 'u8[32768]{0}', space=vmem, size = 0x8000, scoped, tag = 'input window, operand 4, single buffered']
    #allocation11 [shape = 's32[1]{0}', space=sflag, size = 0x4, scoped, tag = 'scoped memory for tpu_custom_call.1']
    #allocation12 [shape = 'u8[16384]{0}', space=vmem, size = 0x4000, scoped, tag = 'input window, operand 6, single buffered']
    #allocation13 [shape = 'u8[65536]{0}', space=vmem, size = 0x10000, scoped, tag = 'input window, operand 7, single buffered']
    #allocation14 [shape = 's32[1]{0}', space=sflag, size = 0x4, scoped, tag = 'scoped memory for tpu_custom_call.1']
    #allocation15 [shape = 'u8[196608]{0}', space=vmem, size = 0x30000, scoped, tag = 'input window, operand 9, single buffered']
    #allocation16 [shape = 'u8[786432]{0}', space=vmem, size = 0xc0000, scoped, tag = 'input window, operand 11, single buffered']
    #allocation17 [shape = 's32[1]{0}', space=sflag, size = 0x4, scoped, tag = 'scoped memory for tpu_custom_call.1']
    #allocation18 [shape = 'u8[524288]{0}', space=vmem, size = 0x80000, scoped, tag = 'input window, operand 13, single buffered']
    #allocation19 [shape = 'u8[4096]{0}', space=vmem, size = 0x1000, scoped, tag = 'output window, operand 0, single buffered']
    #allocation20 [shape = 'u8[8192]{0}', space=vmem, size = 0x2000, scoped, tag = 'output window, operand 1, single buffered']
    #allocation21 [shape = 's32[1]{0}', space=sflag, size = 0x4, scoped, tag = 'scoped memory for tpu_custom_call.1']
    #allocation22 [shape = 'u8[8192]{0}', space=vmem, size = 0x2000, scoped, tag = 'output window, operand 2, single buffered']
    %23 = vsyncpa [#allocation5], 0
    %24 = vsyncpa [#allocation3], 0
    %25 = vsyncpa [#allocation8], 0
    %26 = vsyncpa [#allocation11], 0
    %27 = vsyncpa [#allocation14], 0
    %28 = vsyncpa [#allocation17], 0
    %29 = vsyncpa [#allocation4], 0
    %30 = vsyncpa [#allocation21], 0
    // Predicated region
    $region2: #{tpu_custom_call.1} parent=1 // pred_check
      _
    $region3: #{tpu_custom_call.1} parent=1 // pred_check_branch
      %32 = sbr.rel (0) target = $region5
    $region4: #{tpu_custom_call.1} parent=1 // pred_region
      %s34 = ssub.s32 16, 16
      %35 = vsyncadd [#allocation5], %s34
      %38 = dma.hbm_to_smem %s0, 16, [#allocation2], [#allocation5]
    $region5: #{tpu_custom_call.1} parent=1 // pred_fallthru
      _
    // Predicated region
    $region6: #{tpu_custom_call.1} parent=1 // pred_check
      _
    $region7: #{tpu_custom_call.1} parent=1 // pred_check_branch
      %40 = sbr.rel (0) target = $region9
    $region8: #{tpu_custom_call.1} parent=1 // pred_region
      %s42 = ssub.s32 256, 256
      %43 = vsyncadd [#allocation3], %s42
      %s44 = sshll.u32 [#allocation6], 4
      %s45 = int_to_ptr.vmem [resolvable:$true] %s44
      %50 = dma.hbm_to_vmem [thread:$0]  %s1, 256, %s45, [#allocation3], 128, 128, 8
    $region9: #{tpu_custom_call.1} parent=1 // pred_fallthru
      _
    // Predicated region
    $region10: #{tpu_custom_call.1} parent=1 // pred_check
      _
    $region11: #{tpu_custom_call.1} parent=1 // pred_check_branch
      %52 = sbr.rel (0) target = $region13
    $region12: #{tpu_custom_call.1} parent=1 // pred_region
      %s54 = ssub.s32 256, 256
      %55 = vsyncadd [#allocation8], %s54
      %s56 = sshll.u32 [#allocation7], 4
      %s57 = int_to_ptr.vmem [resolvable:$true] %s56
      %62 = dma.hbm_to_vmem [thread:$0]  %s2, 256, %s57, [#allocation8], 128, 128, 8
    $region13: #{tpu_custom_call.1} parent=1 // pred_fallthru
      _
    // Predicated region
    $region14: #{tpu_custom_call.1} parent=1 // pred_check
      _
    $region15: #{tpu_custom_call.1} parent=1 // pred_check_branch
      %64 = sbr.rel (0) target = $region17
    $region16: #{tpu_custom_call.1} parent=1 // pred_region
      %s66 = ssub.s32 1024, 1024
      %67 = vsyncadd [#allocation8], %s66
      %s68 = sshll.u32 [#allocation9], 4
      %s69 = int_to_ptr.vmem [resolvable:$true] %s68
      %74 = dma.hbm_to_vmem [thread:$0]  %s3, 1024, %s69, [#allocation8], 128, 128, 8
    $region17: #{tpu_custom_call.1} parent=1 // pred_fallthru
      _
    // Predicated region
    $region18: #{tpu_custom_call.1} parent=1 // pred_check
      _
    $region19: #{tpu_custom_call.1} parent=1 // pred_check_branch
      %76 = sbr.rel (0) target = $region21
    $region20: #{tpu_custom_call.1} parent=1 // pred_region
      %s78 = ssub.s32 1024, 1024
      %79 = vsyncadd [#allocation11], %s78
      %s80 = sshll.u32 [#allocation10], 4
      %s81 = int_to_ptr.vmem [resolvable:$true] %s80
      %86 = dma.hbm_to_vmem [thread:$0]  %s4, 1024, %s81, [#allocation11], 128, 128, 8
    $region21: #{tpu_custom_call.1} parent=1 // pred_fallthru
      _
    // Predicated region
    $region22: #{tpu_custom_call.1} parent=1 // pred_check
      _
    $region23: #{tpu_custom_call.1} parent=1 // pred_check_branch
      %88 = sbr.rel (0) target = $region25
    $region24: #{tpu_custom_call.1} parent=1 // pred_region
      _
    $region25: #{tpu_custom_call.1} parent=1 // pred_fallthru
      _
    // Predicated region
    $region26: #{tpu_custom_call.1} parent=1 // pred_check
      _
    $region27: #{tpu_custom_call.1} parent=1 // pred_check_branch
      %90 = sbr.rel (0) target = $region29
    $region28: #{tpu_custom_call.1} parent=1 // pred_region
      %s92 = ssub.s32 512, 512
      %93 = vsyncadd [#allocation11], %s92
      %s94 = sshll.u32 [#allocation12], 4
      %s95 = int_to_ptr.vmem [resolvable:$true] %s94
      %100 = dma.hbm_to_vmem [thread:$0]  %s6, 512, %s95, [#allocation11], 128, 128, 8
    $region29: #{tpu_custom_call.1} parent=1 // pred_fallthru
      _
    // Predicated region
    $region30: #{tpu_custom_call.1} parent=1 // pred_check
      _
    $region31: #{tpu_custom_call.1} parent=1 // pred_check_branch
      %102 = sbr.rel (0) target = $region33
    $region32: #{tpu_custom_call.1} parent=1 // pred_region
      %s104 = ssub.s32 2048, 2048
      %105 = vsyncadd [#allocation14], %s104
      %s106 = sshll.u32 [#allocation13], 4
      %s107 = int_to_ptr.vmem [resolvable:$true] %s106
      %112 = dma.hbm_to_vmem [thread:$0]  %s7, 2048, %s107, [#allocation14], 128, 128, 8
    $region33: #{tpu_custom_call.1} parent=1 // pred_fallthru
      _
    // Predicated region
    $region34: #{tpu_custom_call.1} parent=1 // pred_check
      _
    $region35: #{tpu_custom_call.1} parent=1 // pred_check_branch
      %114 = sbr.rel (0) target = $region37
    $region36: #{tpu_custom_call.1} parent=1 // pred_region
      _
    $region37: #{tpu_custom_call.1} parent=1 // pred_fallthru
      _
    // Predicated region
    $region38: #{tpu_custom_call.1} parent=1 // pred_check
      _
    $region39: #{tpu_custom_call.1} parent=1 // pred_check_branch
      %116 = sbr.rel (0) target = $region41
    $region40: #{tpu_custom_call.1} parent=1 // pred_region
      %s118 = ssub.s32 6144, 6144
      %119 = vsyncadd [#allocation14], %s118
      %s120 = sshll.u32 [#allocation15], 4
      %s121 = int_to_ptr.vmem [resolvable:$true] %s120
      %126 = dma.hbm_to_vmem [thread:$0]  %s9, 6144, %s121, [#allocation14], 128, 128, 8
    $region41: #{tpu_custom_call.1} parent=1 // pred_fallthru
      _
    // Predicated region
    $region42: #{tpu_custom_call.1} parent=1 // pred_check
      _
    $region43: #{tpu_custom_call.1} parent=1 // pred_check_branch
      %128 = sbr.rel (0) target = $region45
    $region44: #{tpu_custom_call.1} parent=1 // pred_region
      _
    $region45: #{tpu_custom_call.1} parent=1 // pred_fallthru
      _
    // Predicated region
    $region46: #{tpu_custom_call.1} parent=1 // pred_check
      _
    $region47: #{tpu_custom_call.1} parent=1 // pred_check_branch
      %130 = sbr.rel (0) target = $region49
    $region48: #{tpu_custom_call.1} parent=1 // pred_region
      %s132 = ssub.s32 24576, 24576
      %133 = vsyncadd [#allocation17], %s132
      %s134 = sshll.u32 [#allocation16], 4
      %s135 = int_to_ptr.vmem [resolvable:$true] %s134
      %140 = dma.hbm_to_vmem [thread:$0]  %s11, 24576, %s135, [#allocation17], 512, 512, 32
    $region49: #{tpu_custom_call.1} parent=1 // pred_fallthru
      _
    // Predicated region
    $region50: #{tpu_custom_call.1} parent=1 // pred_check
      _
    $region51: #{tpu_custom_call.1} parent=1 // pred_check_branch
      %142 = sbr.rel (0) target = $region53
    $region52: #{tpu_custom_call.1} parent=1 // pred_region
      _
    $region53: #{tpu_custom_call.1} parent=1 // pred_fallthru
      _
    // Predicated region
    $region54: #{tpu_custom_call.1} parent=1 // pred_check
      _
    $region55: #{tpu_custom_call.1} parent=1 // pred_check_branch
      %144 = sbr.rel (0) target = $region57
    $region56: #{tpu_custom_call.1} parent=1 // pred_region
      %s146 = ssub.s32 16384, 16384
      %147 = vsyncadd [#allocation17], %s146
      %s148 = sshll.u32 [#allocation18], 4
      %s149 = int_to_ptr.vmem [resolvable:$true] %s148
      %154 = dma.hbm_to_vmem [thread:$0]  %s13, 16384, %s149, [#allocation17], 512, 512, 32
    $region57: #{tpu_custom_call.1} parent=1 // pred_fallthru
      _
    // Predicated region
    $region58: #{tpu_custom_call.1} parent=1 // pred_check
      _
    $region59: #{tpu_custom_call.1} parent=1 // pred_check_branch
      %156 = sbr.rel (0) target = $region61
    $region60: #{tpu_custom_call.1} parent=1 // pred_region
      _
    $region61: #{tpu_custom_call.1} parent=1 // pred_fallthru
      _
    // Predicated region
    $region62: #{tpu_custom_call.1} parent=1 // pred_check
      _
    $region63: #{tpu_custom_call.1} parent=1 // pred_check_branch
      %158 = sbr.rel (0) target = $region65
    $region64: #{tpu_custom_call.1} parent=1 // pred_region
      %159 = dma.done [#allocation5], 16
    $region65: #{tpu_custom_call.1} parent=1 // pred_fallthru
      _
    // Predicated region
    $region66: #{tpu_custom_call.1} parent=1 // pred_check
      _
    $region67: #{tpu_custom_call.1} parent=1 // pred_check_branch
      %161 = sbr.rel (0) target = $region69
    $region68: #{tpu_custom_call.1} parent=1 // pred_region
      %162 = dma.done [#allocation3], 256
    $region69: #{tpu_custom_call.1} parent=1 // pred_fallthru
      _
    // Predicated region
    $region70: #{tpu_custom_call.1} parent=1 // pred_check
      _
    $region71: #{tpu_custom_call.1} parent=1 // pred_check_branch
      %164 = sbr.rel (0) target = $region73
    $region72: #{tpu_custom_call.1} parent=1 // pred_region
      %165 = dma.done [#allocation8], 256
    $region73: #{tpu_custom_call.1} parent=1 // pred_fallthru
      _
    // Predicated region
    $region74: #{tpu_custom_call.1} parent=1 // pred_check
      _
    $region75: #{tpu_custom_call.1} parent=1 // pred_check_branch
      %167 = sbr.rel (0) target = $region77
    $region76: #{tpu_custom_call.1} parent=1 // pred_region
      %168 = dma.done [#allocation8], 1024
    $region77: #{tpu_custom_call.1} parent=1 // pred_fallthru
      _
    // Predicated region
    $region78: #{tpu_custom_call.1} parent=1 // pred_check
      _
    $region79: #{tpu_custom_call.1} parent=1 // pred_check_branch
      %170 = sbr.rel (0) target = $region81
    $region80: #{tpu_custom_call.1} parent=1 // pred_region
      %171 = dma.done [#allocation11], 1024
    $region81: #{tpu_custom_call.1} parent=1 // pred_fallthru
      _
    // Predicated region
    $region82: #{tpu_custom_call.1} parent=1 // pred_check
      _
    $region83: #{tpu_custom_call.1} parent=1 // pred_check_branch
      %173 = sbr.rel (0) target = $region85
    $region84: #{tpu_custom_call.1} parent=1 // pred_region
      %174 = dma.done [#allocation11], 512
    $region85: #{tpu_custom_call.1} parent=1 // pred_fallthru
      _
    // Predicated region
    $region86: #{tpu_custom_call.1} parent=1 // pred_check
      _
    $region87: #{tpu_custom_call.1} parent=1 // pred_check_branch
      %176 = sbr.rel (0) target = $region89
    $region88: #{tpu_custom_call.1} parent=1 // pred_region
      %177 = dma.done [#allocation14], 2048
    $region89: #{tpu_custom_call.1} parent=1 // pred_fallthru
      _
    // Predicated region
    $region90: #{tpu_custom_call.1} parent=1 // pred_check
      _
    $region91: #{tpu_custom_call.1} parent=1 // pred_check_branch
      %179 = sbr.rel (0) target = $region93
    $region92: #{tpu_custom_call.1} parent=1 // pred_region
      %180 = dma.done [#allocation14], 6144
    $region93: #{tpu_custom_call.1} parent=1 // pred_fallthru
      _
    // Predicated region
    $region94: #{tpu_custom_call.1} parent=1 // pred_check
      _
    $region95: #{tpu_custom_call.1} parent=1 // pred_check_branch
      %182 = sbr.rel (0) target = $region97
    $region96: #{tpu_custom_call.1} parent=1 // pred_region
      %183 = dma.done [#allocation17], 24576
    $region97: #{tpu_custom_call.1} parent=1 // pred_fallthru
      _
    // Predicated region
    $region98: #{tpu_custom_call.1} parent=1 // pred_check
      _
    $region99: #{tpu_custom_call.1} parent=1 // pred_check_branch
      %185 = sbr.rel (0) target = $region101
    $region100: #{tpu_custom_call.1} parent=1 // pred_region
      %186 = dma.done [#allocation17], 16384
    $region101: #{tpu_custom_call.1} parent=1 // pred_fallthru
      _
    %187 = sfence
    %s188 = sld [smem:[#allocation2]]
    %s189 = scalar_lea.vmem [#allocation12], %s188
    %v190 = vld [vmem:[%s189] sm:$0x1]
    %s191 = sld [smem:[#allocation2 + $0x1]]
    %s192 = scalar_lea.vmem [#allocation12], %s191
    %v193 = vld [vmem:[%s192] sm:$0x1]
    %s194 = sld [smem:[#allocation2 + $0x2]]
    %s195 = scalar_lea.vmem [#allocation12], %s194
    %v196 = vld [vmem:[%s195] sm:$0x1]
    %s197 = sld [smem:[#allocation2 + $0x3]]
    %s198 = scalar_lea.vmem [#allocation12], %s197
    %v199 = vld [vmem:[%s198] sm:$0x1]
    %s200 = sld [smem:[#allocation2 + $0x4]]
    %s201 = scalar_lea.vmem [#allocation12], %s200
    %v202 = vld [vmem:[%s201] sm:$0x1]
    %s203 = sld [smem:[#allocation2 + $0x5]]
    %s204 = scalar_lea.vmem [#allocation12], %s203
    %v205 = vld [vmem:[%s204] sm:$0x1]
    %s206 = sld [smem:[#allocation2 + $0x6]]
    %s207 = scalar_lea.vmem [#allocation12], %s206
    %v208 = vld [vmem:[%s207] sm:$0x1]
    %s209 = sld [smem:[#allocation2 + $0x7]]
    %s210 = scalar_lea.vmem [#allocation12], %s209
    %v211 = vld [vmem:[%s210] sm:$0x1]
    %v213 = vrot.slane %v193, 7
    %v216 = vrot.slane %v196, 6
    %v219 = vrot.slane %v199, 5
    %v222 = vrot.slane %v202, 4
    %v225 = vrot.slane %v205, 3
    %v228 = vrot.slane %v208, 2
    %v231 = vrot.slane %v211, 1
    %vm233 = vcmask 1040384
    %v234 = vsel %vm233, %v190, %v213
    %vm235 = vcmask 1041408
    %v236 = vsel %vm235, %v234, %v216
    %vm237 = vcmask 1042432
    %v238 = vsel %vm237, %v236, %v219
    %vm239 = vcmask 1043456
    %v240 = vsel %vm239, %v238, %v222
    %vm241 = vcmask 1044480
    %v242 = vsel %vm241, %v240, %v225
    %vm243 = vcmask 1045504
    %v244 = vsel %vm243, %v242, %v228
    %vm245 = vcmask 1046528
    %v246 = vsel %vm245, %v244, %v231
    %s247 = scalar_lea.vmem [#allocation6], 8
    %v248 = vld [vmem:[%s247] sm:$0xff]
    %v249 = vld [vmem:[#allocation13] sm:$0xff]
    %v250 = vld [vmem:[#allocation13 + $0x8] sm:$0xff]
    %v251 = vld [vmem:[#allocation13 + $0x10] sm:$0xff]
    %v252 = vld [vmem:[#allocation13 + $0x18] sm:$0xff]
    %v253 = vld [vmem:[#allocation13 + $0x20] sm:$0xff]
    %v254 = vld [vmem:[#allocation13 + $0x28] sm:$0xff]
    %v255 = vld [vmem:[#allocation13 + $0x30] sm:$0xff]
    %v256 = vld [vmem:[#allocation13 + $0x38] sm:$0xff]
    %v257 = vld [vmem:[#allocation13 + $0x40] sm:$0xff]
    %v258 = vld [vmem:[#allocation13 + $0x48] sm:$0xff]
    %v259 = vld [vmem:[#allocation13 + $0x50] sm:$0xff]
    %v260 = vld [vmem:[#allocation13 + $0x58] sm:$0xff]
    %v261 = vld [vmem:[#allocation13 + $0x60] sm:$0xff]
    %v262 = vld [vmem:[#allocation13 + $0x68] sm:$0xff]
    %v263 = vld [vmem:[#allocation13 + $0x70] sm:$0xff]
    %v264 = vld [vmem:[#allocation13 + $0x78] sm:$0xff]
    %265 = vmatprep.subr.mxu0 0.0
    %266 = vmatpush1.msra.mxu0 %v249
    %267 = vmatprep.subr.mxu0 0.0
    %268 = vmatpush1.msra.mxu0 %v250
    %269 = vmatprep.subr.mxu0 0.0
    %270 = vmatpush1.msra.mxu0 %v251
    %271 = vmatprep.subr.mxu0 0.0
    %272 = vmatpush1.msra.mxu0 %v252
    %273 = vmatprep.subr.mxu0 0.0
    %274 = vmatpush1.msra.mxu0 %v253
    %275 = vmatprep.subr.mxu0 0.0
    %276 = vmatpush1.msra.mxu0 %v254
    %277 = vmatprep.subr.mxu0 0.0
    %278 = vmatpush1.msra.mxu0 %v255
    %279 = vmatprep.subr.mxu0 0.0
    %280 = vmatpush1.msra.mxu0 %v256
    %281 = vmatprep.subr.mxu0 0.0
    %282 = vmatpush1.msra.mxu0 %v257
    %283 = vmatprep.subr.mxu0 0.0
    %284 = vmatpush1.msra.mxu0 %v258
    %285 = vmatprep.subr.mxu0 0.0
    %286 = vmatpush1.msra.mxu0 %v259
    %287 = vmatprep.subr.mxu0 0.0
    %288 = vmatpush1.msra.mxu0 %v260
    %289 = vmatprep.subr.mxu0 0.0
    %290 = vmatpush1.msra.mxu0 %v261
    %291 = vmatprep.subr.mxu0 0.0
    %292 = vmatpush1.msra.mxu0 %v262
    %293 = vmatprep.subr.mxu0 0.0
    %294 = vmatpush1.msra.mxu0 %v263
    %295 = vmatprep.subr.mxu0 0.0
    %296 = vmatpush1.msra.mxu0 %v264
    %297 = vmatprep.subr.mxu0 0.0
    %298 = vmatpush1.msra.mxu0 0.0
    %299 = vmatprep.subr.mxu0 0.0
    %300 = vmatpush1.msra.mxu0 0.0
    %301 = vmatprep.subr.mxu0 0.0
    %302 = vmatpush1.msra.mxu0 0.0
    %303 = vmatprep.subr.mxu0 0.0
    %304 = vmatpush1.msra.mxu0 0.0
    %305 = vmatprep.subr.mxu0 0.0
    %306 = vmatpush1.msra.mxu0 0.0
    %307 = vmatprep.subr.mxu0 0.0
    %308 = vmatpush1.msra.mxu0 0.0
    %309 = vmatprep.subr.mxu0 0.0
    %310 = vmatpush1.msra.mxu0 0.0
    %311 = vmatprep.subr.mxu0 0.0
    %312 = vmatpush1.msra.mxu0 0.0
    %313 = vmatprep.subr.mxu0 0.0
    %314 = vmatpush1.msra.mxu0 0.0
    %315 = vmatprep.subr.mxu0 0.0
    %316 = vmatpush1.msra.mxu0 0.0
    %317 = vmatprep.subr.mxu0 0.0
    %318 = vmatpush1.msra.mxu0 0.0
    %319 = vmatprep.subr.mxu0 0.0
    %320 = vmatpush1.msra.mxu0 0.0
    %321 = vmatprep.subr.mxu0 0.0
    %322 = vmatpush1.msra.mxu0 0.0
    %323 = vmatprep.subr.mxu0 0.0
    %324 = vmatpush1.msra.mxu0 0.0
    %325 = vmatprep.subr.mxu0 0.0
    %326 = vmatpush1.msra.mxu0 0.0
    %327 = vmatprep.subr.mxu0 0.0
    %328 = vmatpush1.msra.mxu0 0.0
    %329 = vmatprep.mubr.f32.mxu0 0.0
    %330 = vmatmul.mubr.f32.gmra.mrb[0].mxu0 %v248
    %v331 = vpop.f32.mrb[0].mxu0
    %v332 = vadd.f32 0.0, %v331
    %v333 = vpop.f32.mrb[0].mxu0
    %334 = vdwg.mxu0
    %v335 = vld [vmem:[#allocation10] sm:$0xff]
    %v336 = vld [vmem:[#allocation10 + $0x8] sm:$0xff]
    %v337 = vld [vmem:[#allocation10 + $0x10] sm:$0xff]
    %v338 = vld [vmem:[#allocation10 + $0x18] sm:$0xff]
    %v339 = vld [vmem:[#allocation10 + $0x20] sm:$0xff]
    %v340 = vld [vmem:[#allocation10 + $0x28] sm:$0xff]
    %v341 = vld [vmem:[#allocation10 + $0x30] sm:$0xff]
    %v342 = vld [vmem:[#allocation10 + $0x38] sm:$0xff]
    %v344 = vcombine.high %v332, %v332
    %v346 = vunpack.c.l.s4 1966171168
    %v347 = vunpack.c.0.s8 %v346
    %v348 = vlaneseq
    %v349 = vshrl.u32 %v348, 7
    %v350 = vsub.s32 %v347, %v349
    %v351 = vrot.slane %v332, %v350
    %v353 = vunpack.c.l.s4 1966171168
    %v354 = vunpack.c.0.s8 %v353
    %v355 = vlaneseq
    %v356 = vshrl.u32 %v355, 7
    %v357 = vsub.s32 %v354, %v356
    %v358 = vrot.slane %v344, %v357
    %v359 = vcombine.high %v351, %v351
    %v360 = vcombine.high %v358, %v358
    %v362 = vunpack.c.l.s4 1966171168
    %v363 = vunpack.c.0.s8 %v362
    %v364 = vlaneseq
    %v365 = vshrl.u32 %v364, 7
    %v366 = vsub.s32 %v363, %v365
    %v367 = vrot.slane %v351, %v366
    %v369 = vunpack.c.l.s4 1966171168
    %v370 = vunpack.c.0.s8 %v369
    %v371 = vlaneseq
    %v372 = vshrl.u32 %v371, 7
    %v373 = vsub.s32 %v370, %v372
    %v374 = vrot.slane %v358, %v373
    %v376 = vunpack.c.l.s4 1966171168
    %v377 = vunpack.c.0.s8 %v376
    %v378 = vlaneseq
    %v379 = vshrl.u32 %v378, 7
    %v380 = vsub.s32 %v377, %v379
    %v381 = vrot.slane %v359, %v380
    %v383 = vunpack.c.l.s4 1966171168
    %v384 = vunpack.c.0.s8 %v383
    %v385 = vlaneseq
    %v386 = vshrl.u32 %v385, 7
    %v387 = vsub.s32 %v384, %v386
    %v388 = vrot.slane %v360, %v387
    %v389 = vcombine.high %v367, %v367
    %v390 = vcombine.high %v374, %v374
    %v391 = vcombine.high %v381, %v381
    %v392 = vcombine.high %v388, %v388
    %v393 = vlaneseq
    %v394 = vshrl.u32 %v393, 7
    %v395 = vsub.s32 0, %v394
    %v396 = vrot.slane %v367, %v395
    %v397 = vlaneseq
    %v398 = vshrl.u32 %v397, 7
    %v399 = vsub.s32 0, %v398
    %v400 = vrot.slane %v381, %v399
    %v401 = vlaneseq
    %v402 = vshrl.u32 %v401, 7
    %v403 = vsub.s32 0, %v402
    %v404 = vrot.slane %v389, %v403
    %v405 = vlaneseq
    %v406 = vshrl.u32 %v405, 7
    %v407 = vsub.s32 0, %v406
    %v408 = vrot.slane %v391, %v407
    %v409 = vlaneseq
    %v410 = vshrl.u32 %v409, 7
    %v411 = vsub.s32 0, %v410
    %v412 = vrot.slane %v374, %v411
    %v413 = vlaneseq
    %v414 = vshrl.u32 %v413, 7
    %v415 = vsub.s32 0, %v414
    %v416 = vrot.slane %v388, %v415
    %v417 = vlaneseq
    %v418 = vshrl.u32 %v417, 7
    %v419 = vsub.s32 0, %v418
    %v420 = vrot.slane %v390, %v419
    %v421 = vlaneseq
    %v422 = vshrl.u32 %v421, 7
    %v423 = vsub.s32 0, %v422
    %v424 = vrot.slane %v392, %v423
    %v433 = vadd.f32 %v335, %v396
    %v434 = vadd.f32 %v336, %v400
    %v435 = vadd.f32 %v337, %v404
    %v436 = vadd.f32 %v338, %v408
    %v437 = vadd.f32 %v339, %v412
    %v438 = vadd.f32 %v340, %v416
    %v439 = vadd.f32 %v341, %v420
    %v440 = vadd.f32 %v342, %v424
    %v441 = vtanh.pop %v433
    %v442 = vtanh.pop %v434
    %v443 = vtanh.pop %v435
    %v444 = vtanh.pop %v436
    %v445 = vtanh.pop %v437
    %v446 = vtanh.pop %v438
    %v447 = vtanh.pop %v439
    %v448 = vtanh.pop %v440
    %v449 = vld [vmem:[%s8] sm:$0x1]
    %v451 = vlaneseq
    %v452 = vshrl.u32 %v451, 7
    %v453 = vsub.s32 0, %v452
    %v454 = vrot.slane %v449, %v453
    %v456 = vmul.f32 %v441, %v454
    %v457 = vmul.f32 %v442, %v454
    %v458 = vmul.f32 %v443, %v454
    %v459 = vmul.f32 %v444, %v454
    %v460 = vmul.f32 %v445, %v454
    %v461 = vmul.f32 %v446, %v454
    %v462 = vmul.f32 %v447, %v454
    %v463 = vmul.f32 %v448, %v454
    %464 = vadd.xlane.f32.xlu0 %v456
    %v465 = vpop.xlane.xlu0 %464
    %466 = vadd.xlane.f32.xlu0 %v457
    %v467 = vpop.xlane.xlu0 %466
    %468 = vadd.xlane.f32.xlu0 %v458
    %v469 = vpop.xlane.xlu0 %468
    %470 = vadd.xlane.f32.xlu0 %v459
    %v471 = vpop.xlane.xlu0 %470
    %472 = vadd.xlane.f32.xlu0 %v460
    %v473 = vpop.xlane.xlu0 %472
    %474 = vadd.xlane.f32.xlu0 %v461
    %v475 = vpop.xlane.xlu0 %474
    %476 = vadd.xlane.f32.xlu0 %v462
    %v477 = vpop.xlane.xlu0 %476
    %478 = vadd.xlane.f32.xlu0 %v463
    %v479 = vpop.xlane.xlu0 %478
    %v480 = vld [vmem:[%s5] sm:$0xff]
    %vm481 = vcmp.gt.f32.partialorder %v480, 0.0
    %v490 = vlaneseq
    %v491 = vand.u32 %v490, 127
    %v492 = vlaneseq
    %v493 = vshrl.u32 %v492, 7
    %v494 = vsub.s32 %v491, %v493
    %v495 = vrot.slane %v465, %v494
    %v496 = vlaneseq
    %v497 = vshrl.u32 %v496, 7
    %v498 = vsub.s32 %v491, %v497
    %v499 = vrot.slane %v467, %v498
    %v500 = vlaneseq
    %v501 = vshrl.u32 %v500, 7
    %v502 = vsub.s32 %v491, %v501
    %v503 = vrot.slane %v469, %v502
    %v504 = vlaneseq
    %v505 = vshrl.u32 %v504, 7
    %v506 = vsub.s32 %v491, %v505
    %v507 = vrot.slane %v471, %v506
    %v508 = vlaneseq
    %v509 = vshrl.u32 %v508, 7
    %v510 = vsub.s32 %v491, %v509
    %v511 = vrot.slane %v473, %v510
    %v512 = vlaneseq
    %v513 = vshrl.u32 %v512, 7
    %v514 = vsub.s32 %v491, %v513
    %v515 = vrot.slane %v475, %v514
    %v516 = vlaneseq
    %v517 = vshrl.u32 %v516, 7
    %v518 = vsub.s32 %v491, %v517
    %v519 = vrot.slane %v477, %v518
    %v520 = vlaneseq
    %v521 = vshrl.u32 %v520, 7
    %v522 = vsub.s32 %v491, %v521
    %v523 = vrot.slane %v479, %v522
    %vm524 = vcmask 1041409
    %v525 = vsel %vm524, %v499, %v495
    %vm526 = vcmask 1042434
    %v527 = vsel %vm526, %v503, %v525
    %vm528 = vcmask 1043459
    %v529 = vsel %vm528, %v507, %v527
    %vm530 = vcmask 1044484
    %v531 = vsel %vm530, %v511, %v529
    %vm532 = vcmask 1045509
    %v533 = vsel %vm532, %v515, %v531
    %vm534 = vcmask 1046534
    %v535 = vsel %vm534, %v519, %v533
    %vm536 = vcmask 1047559
    %v537 = vsel %vm536, %v523, %v535
    %v539 = vsel %vm481, %v537, -1e+09
    %vm540 = vcmask 64512
    %v541 = vsel %vm540, %v539, -inf
    %542 = vmax.xlane.f32.xlu0 %v541
    %v543 = vpop.xlane.xlu0 %542
    %v544 = vsub.f32 %v539, %v543
    %v545 = vmul.f32 %v544, 1.442695
    %v546 = vpow.pop %v545
    %v547 = vsel %vm540, %v546, 0.0
    %548 = vadd.xlane.f32.xlu0 %v547
    %v549 = vpop.xlane.xlu0 %548
    %v550 = vrcp.pop %v549
    %v551 = vmul.f32 %v546, %v550
    %v552 = vld [vmem:[#allocation9] sm:$0xff]
    %v553 = vld [vmem:[#allocation9 + $0x8] sm:$0xff]
    %v554 = vld [vmem:[#allocation9 + $0x10] sm:$0xff]
    %v555 = vld [vmem:[#allocation9 + $0x18] sm:$0xff]
    %v556 = vld [vmem:[#allocation9 + $0x20] sm:$0xff]
    %v557 = vld [vmem:[#allocation9 + $0x28] sm:$0xff]
    %v558 = vld [vmem:[#allocation9 + $0x30] sm:$0xff]
    %v559 = vld [vmem:[#allocation9 + $0x38] sm:$0xff]
    %v561 = vcombine.high %v551, %v551
    %v563 = vunpack.c.l.s4 1966171168
    %v564 = vunpack.c.0.s8 %v563
    %v565 = vlaneseq
    %v566 = vshrl.u32 %v565, 7
    %v567 = vsub.s32 %v564, %v566
    %v568 = vrot.slane %v551, %v567
    %v570 = vunpack.c.l.s4 1966171168
    %v571 = vunpack.c.0.s8 %v570
    %v572 = vlaneseq
    %v573 = vshrl.u32 %v572, 7
    %v574 = vsub.s32 %v571, %v573
    %v575 = vrot.slane %v561, %v574
    %v576 = vcombine.high %v568, %v568
    %v577 = vcombine.high %v575, %v575
    %v579 = vunpack.c.l.s4 1966171168
    %v580 = vunpack.c.0.s8 %v579
    %v581 = vlaneseq
    %v582 = vshrl.u32 %v581, 7
    %v583 = vsub.s32 %v580, %v582
    %v584 = vrot.slane %v568, %v583
    %v586 = vunpack.c.l.s4 1966171168
    %v587 = vunpack.c.0.s8 %v586
    %v588 = vlaneseq
    %v589 = vshrl.u32 %v588, 7
    %v590 = vsub.s32 %v587, %v589
    %v591 = vrot.slane %v575, %v590
    %v593 = vunpack.c.l.s4 1966171168
    %v594 = vunpack.c.0.s8 %v593
    %v595 = vlaneseq
    %v596 = vshrl.u32 %v595, 7
    %v597 = vsub.s32 %v594, %v596
    %v598 = vrot.slane %v576, %v597
    %v600 = vunpack.c.l.s4 1966171168
    %v601 = vunpack.c.0.s8 %v600
    %v602 = vlaneseq
    %v603 = vshrl.u32 %v602, 7
    %v604 = vsub.s32 %v601, %v603
    %v605 = vrot.slane %v577, %v604
    %v606 = vcombine.high %v584, %v584
    %v607 = vcombine.high %v591, %v591
    %v608 = vcombine.high %v598, %v598
    %v609 = vcombine.high %v605, %v605
    %v610 = vsel %vm540, %v584, 0
    %612 = vmatprep.subr.mxu0 0.0
    %613 = vmatpush1.msra.mxu0 %v552
    %614 = vmatprep.subr.mxu0 0.0
    %615 = vmatpush1.msra.mxu0 0.0
    %616 = vmatprep.subr.mxu0 0.0
    %617 = vmatpush1.msra.mxu0 0.0
    %618 = vmatprep.subr.mxu0 0.0
    %619 = vmatpush1.msra.mxu0 0.0
    %620 = vmatprep.subr.mxu0 0.0
    %621 = vmatpush1.msra.mxu0 0.0
    %622 = vmatprep.subr.mxu0 0.0
    %623 = vmatpush1.msra.mxu0 0.0
    %624 = vmatprep.subr.mxu0 0.0
    %625 = vmatpush1.msra.mxu0 0.0
    %626 = vmatprep.subr.mxu0 0.0
    %627 = vmatpush1.msra.mxu0 0.0
    %628 = vmatprep.subr.mxu0 0.0
    %629 = vmatpush1.msra.mxu0 0.0
    %630 = vmatprep.subr.mxu0 0.0
    %631 = vmatpush1.msra.mxu0 0.0
    %632 = vmatprep.subr.mxu0 0.0
    %633 = vmatpush1.msra.mxu0 0.0
    %634 = vmatprep.subr.mxu0 0.0
    %635 = vmatpush1.msra.mxu0 0.0
    %636 = vmatprep.subr.mxu0 0.0
    %637 = vmatpush1.msra.mxu0 0.0
    %638 = vmatprep.subr.mxu0 0.0
    %639 = vmatpush1.msra.mxu0 0.0
    %640 = vmatprep.subr.mxu0 0.0
    %641 = vmatpush1.msra.mxu0 0.0
    %642 = vmatprep.subr.mxu0 0.0
    %643 = vmatpush1.msra.mxu0 0.0
    %644 = vmatprep.subr.mxu0 0.0
    %645 = vmatpush1.msra.mxu0 0.0
    %646 = vmatprep.subr.mxu0 0.0
    %647 = vmatpush1.msra.mxu0 0.0
    %648 = vmatprep.subr.mxu0 0.0
    %649 = vmatpush1.msra.mxu0 0.0
    %650 = vmatprep.subr.mxu0 0.0
    %651 = vmatpush1.msra.mxu0 0.0
    %652 = vmatprep.subr.mxu0 0.0
    %653 = vmatpush1.msra.mxu0 0.0
    %654 = vmatprep.subr.mxu0 0.0
    %655 = vmatpush1.msra.mxu0 0.0
    %656 = vmatprep.subr.mxu0 0.0
    %657 = vmatpush1.msra.mxu0 0.0
    %658 = vmatprep.subr.mxu0 0.0
    %659 = vmatpush1.msra.mxu0 0.0
    %660 = vmatprep.subr.mxu0 0.0
    %661 = vmatpush1.msra.mxu0 0.0
    %662 = vmatprep.subr.mxu0 0.0
    %663 = vmatpush1.msra.mxu0 0.0
    %664 = vmatprep.subr.mxu0 0.0
    %665 = vmatpush1.msra.mxu0 0.0
    %666 = vmatprep.subr.mxu0 0.0
    %667 = vmatpush1.msra.mxu0 0.0
    %668 = vmatprep.subr.mxu0 0.0
    %669 = vmatpush1.msra.mxu0 0.0
    %670 = vmatprep.subr.mxu0 0.0
    %671 = vmatpush1.msra.mxu0 0.0
    %672 = vmatprep.subr.mxu0 0.0
    %673 = vmatpush1.msra.mxu0 0.0
    %674 = vmatprep.subr.mxu0 0.0
    %675 = vmatpush1.msra.mxu0 0.0
    %676 = vmatprep.mubr.f32.mxu0 0.0
    %677 = vmatmul.mubr.f32.gmra.mrb[0].mxu0 %v610
    %v678 = vpop.f32.mrb[0].mxu0
    %v679 = vadd.f32 0.0, %v678
    %v680 = vpop.f32.mrb[0].mxu0
    %681 = vdwg.mxu0
    %v682 = vsel %vm540, %v598, 0
    %684 = vmatprep.subr.mxu0 0.0
    %685 = vmatpush1.msra.mxu0 %v553
    %686 = vmatprep.subr.mxu0 0.0
    %687 = vmatpush1.msra.mxu0 0.0
    %688 = vmatprep.subr.mxu0 0.0
    %689 = vmatpush1.msra.mxu0 0.0
    %690 = vmatprep.subr.mxu0 0.0
    %691 = vmatpush1.msra.mxu0 0.0
    %692 = vmatprep.subr.mxu0 0.0
    %693 = vmatpush1.msra.mxu0 0.0
    %694 = vmatprep.subr.mxu0 0.0
    %695 = vmatpush1.msra.mxu0 0.0
    %696 = vmatprep.subr.mxu0 0.0
    %697 = vmatpush1.msra.mxu0 0.0
    %698 = vmatprep.subr.mxu0 0.0
    %699 = vmatpush1.msra.mxu0 0.0
    %700 = vmatprep.subr.mxu0 0.0
    %701 = vmatpush1.msra.mxu0 0.0
    %702 = vmatprep.subr.mxu0 0.0
    %703 = vmatpush1.msra.mxu0 0.0
    %704 = vmatprep.subr.mxu0 0.0
    %705 = vmatpush1.msra.mxu0 0.0
    %706 = vmatprep.subr.mxu0 0.0
    %707 = vmatpush1.msra.mxu0 0.0
    %708 = vmatprep.subr.mxu0 0.0
    %709 = vmatpush1.msra.mxu0 0.0
    %710 = vmatprep.subr.mxu0 0.0
    %711 = vmatpush1.msra.mxu0 0.0
    %712 = vmatprep.subr.mxu0 0.0
    %713 = vmatpush1.msra.mxu0 0.0
    %714 = vmatprep.subr.mxu0 0.0
    %715 = vmatpush1.msra.mxu0 0.0
    %716 = vmatprep.subr.mxu0 0.0
    %717 = vmatpush1.msra.mxu0 0.0
    %718 = vmatprep.subr.mxu0 0.0
    %719 = vmatpush1.msra.mxu0 0.0
    %720 = vmatprep.subr.mxu0 0.0
    %721 = vmatpush1.msra.mxu0 0.0
    %722 = vmatprep.subr.mxu0 0.0
    %723 = vmatpush1.msra.mxu0 0.0
    %724 = vmatprep.subr.mxu0 0.0
    %725 = vmatpush1.msra.mxu0 0.0
    %726 = vmatprep.subr.mxu0 0.0
    %727 = vmatpush1.msra.mxu0 0.0
    %728 = vmatprep.subr.mxu0 0.0
    %729 = vmatpush1.msra.mxu0 0.0
    %730 = vmatprep.subr.mxu0 0.0
    %731 = vmatpush1.msra.mxu0 0.0
    %732 = vmatprep.subr.mxu0 0.0
    %733 = vmatpush1.msra.mxu0 0.0
    %734 = vmatprep.subr.mxu0 0.0
    %735 = vmatpush1.msra.mxu0 0.0
    %736 = vmatprep.subr.mxu0 0.0
    %737 = vmatpush1.msra.mxu0 0.0
    %738 = vmatprep.subr.mxu0 0.0
    %739 = vmatpush1.msra.mxu0 0.0
    %740 = vmatprep.subr.mxu0 0.0
    %741 = vmatpush1.msra.mxu0 0.0
    %742 = vmatprep.subr.mxu0 0.0
    %743 = vmatpush1.msra.mxu0 0.0
    %744 = vmatprep.subr.mxu0 0.0
    %745 = vmatpush1.msra.mxu0 0.0
    %746 = vmatprep.subr.mxu0 0.0
    %747 = vmatpush1.msra.mxu0 0.0
    %748 = vmatprep.mubr.f32.mxu0 0.0
    %749 = vmatmul.mubr.f32.gmra.mrb[0].mxu0 %v682
    %v750 = vpop.f32.mrb[0].mxu0
    %v751 = vadd.f32 0.0, %v750
    %v752 = vpop.f32.mrb[0].mxu0
    %753 = vdwg.mxu0
    %v754 = vsel %vm540, %v606, 0
    %756 = vmatprep.subr.mxu0 0.0
    %757 = vmatpush1.msra.mxu0 %v554
    %758 = vmatprep.subr.mxu0 0.0
    %759 = vmatpush1.msra.mxu0 0.0
    %760 = vmatprep.subr.mxu0 0.0
    %761 = vmatpush1.msra.mxu0 0.0
    %762 = vmatprep.subr.mxu0 0.0
    %763 = vmatpush1.msra.mxu0 0.0
    %764 = vmatprep.subr.mxu0 0.0
    %765 = vmatpush1.msra.mxu0 0.0
    %766 = vmatprep.subr.mxu0 0.0
    %767 = vmatpush1.msra.mxu0 0.0
    %768 = vmatprep.subr.mxu0 0.0
    %769 = vmatpush1.msra.mxu0 0.0
    %770 = vmatprep.subr.mxu0 0.0
    %771 = vmatpush1.msra.mxu0 0.0
    %772 = vmatprep.subr.mxu0 0.0
    %773 = vmatpush1.msra.mxu0 0.0
    %774 = vmatprep.subr.mxu0 0.0
    %775 = vmatpush1.msra.mxu0 0.0
    %776 = vmatprep.subr.mxu0 0.0
    %777 = vmatpush1.msra.mxu0 0.0
    %778 = vmatprep.subr.mxu0 0.0
    %779 = vmatpush1.msra.mxu0 0.0
    %780 = vmatprep.subr.mxu0 0.0
    %781 = vmatpush1.msra.mxu0 0.0
    %782 = vmatprep.subr.mxu0 0.0
    %783 = vmatpush1.msra.mxu0 0.0
    %784 = vmatprep.subr.mxu0 0.0
    %785 = vmatpush1.msra.mxu0 0.0
    %786 = vmatprep.subr.mxu0 0.0
    %787 = vmatpush1.msra.mxu0 0.0
    %788 = vmatprep.subr.mxu0 0.0
    %789 = vmatpush1.msra.mxu0 0.0
    %790 = vmatprep.subr.mxu0 0.0
    %791 = vmatpush1.msra.mxu0 0.0
    %792 = vmatprep.subr.mxu0 0.0
    %793 = vmatpush1.msra.mxu0 0.0
    %794 = vmatprep.subr.mxu0 0.0
    %795 = vmatpush1.msra.mxu0 0.0
    %796 = vmatprep.subr.mxu0 0.0
    %797 = vmatpush1.msra.mxu0 0.0
    %798 = vmatprep.subr.mxu0 0.0
    %799 = vmatpush1.msra.mxu0 0.0
    %800 = vmatprep.subr.mxu0 0.0
    %801 = vmatpush1.msra.mxu0 0.0
    %802 = vmatprep.subr.mxu0 0.0
    %803 = vmatpush1.msra.mxu0 0.0
    %804 = vmatprep.subr.mxu0 0.0
    %805 = vmatpush1.msra.mxu0 0.0
    %806 = vmatprep.subr.mxu0 0.0
    %807 = vmatpush1.msra.mxu0 0.0
    %808 = vmatprep.subr.mxu0 0.0
    %809 = vmatpush1.msra.mxu0 0.0
    %810 = vmatprep.subr.mxu0 0.0
    %811 = vmatpush1.msra.mxu0 0.0
    %812 = vmatprep.subr.mxu0 0.0
    %813 = vmatpush1.msra.mxu0 0.0
    %814 = vmatprep.subr.mxu0 0.0
    %815 = vmatpush1.msra.mxu0 0.0
    %816 = vmatprep.subr.mxu0 0.0
    %817 = vmatpush1.msra.mxu0 0.0
    %818 = vmatprep.subr.mxu0 0.0
    %819 = vmatpush1.msra.mxu0 0.0
    %820 = vmatprep.mubr.f32.mxu0 0.0
    %821 = vmatmul.mubr.f32.gmra.mrb[0].mxu0 %v754
    %v822 = vpop.f32.mrb[0].mxu0
    %v823 = vadd.f32 0.0, %v822
    %v824 = vpop.f32.mrb[0].mxu0
    %825 = vdwg.mxu0
    %v826 = vsel %vm540, %v608, 0
    %828 = vmatprep.subr.mxu0 0.0
    %829 = vmatpush1.msra.mxu0 %v555
    %830 = vmatprep.subr.mxu0 0.0
    %831 = vmatpush1.msra.mxu0 0.0
    %832 = vmatprep.subr.mxu0 0.0
    %833 = vmatpush1.msra.mxu0 0.0
    %834 = vmatprep.subr.mxu0 0.0
    %835 = vmatpush1.msra.mxu0 0.0
    %836 = vmatprep.subr.mxu0 0.0
    %837 = vmatpush1.msra.mxu0 0.0
    %838 = vmatprep.subr.mxu0 0.0
    %839 = vmatpush1.msra.mxu0 0.0
    %840 = vmatprep.subr.mxu0 0.0
    %841 = vmatpush1.msra.mxu0 0.0
    %842 = vmatprep.subr.mxu0 0.0
    %843 = vmatpush1.msra.mxu0 0.0
    %844 = vmatprep.subr.mxu0 0.0
    %845 = vmatpush1.msra.mxu0 0.0
    %846 = vmatprep.subr.mxu0 0.0
    %847 = vmatpush1.msra.mxu0 0.0
    %848 = vmatprep.subr.mxu0 0.0
    %849 = vmatpush1.msra.mxu0 0.0
    %850 = vmatprep.subr.mxu0 0.0
    %851 = vmatpush1.msra.mxu0 0.0
    %852 = vmatprep.subr.mxu0 0.0
    %853 = vmatpush1.msra.mxu0 0.0
    %854 = vmatprep.subr.mxu0 0.0
    %855 = vmatpush1.msra.mxu0 0.0
    %856 = vmatprep.subr.mxu0 0.0
    %857 = vmatpush1.msra.mxu0 0.0
    %858 = vmatprep.subr.mxu0 0.0
    %859 = vmatpush1.msra.mxu0 0.0
    %860 = vmatprep.subr.mxu0 0.0
    %861 = vmatpush1.msra.mxu0 0.0
    %862 = vmatprep.subr.mxu0 0.0
    %863 = vmatpush1.msra.mxu0 0.0
    %864 = vmatprep.subr.mxu0 0.0
    %865 = vmatpush1.msra.mxu0 0.0
    %866 = vmatprep.subr.mxu0 0.0
    %867 = vmatpush1.msra.mxu0 0.0
    %868 = vmatprep.subr.mxu0 0.0
    %869 = vmatpush1.msra.mxu0 0.0
    %870 = vmatprep.subr.mxu0 0.0
    %871 = vmatpush1.msra.mxu0 0.0
    %872 = vmatprep.subr.mxu0 0.0
    %873 = vmatpush1.msra.mxu0 0.0
    %874 = vmatprep.subr.mxu0 0.0
    %875 = vmatpush1.msra.mxu0 0.0
    %876 = vmatprep.subr.mxu0 0.0
    %877 = vmatpush1.msra.mxu0 0.0
    %878 = vmatprep.subr.mxu0 0.0
    %879 = vmatpush1.msra.mxu0 0.0
    %880 = vmatprep.subr.mxu0 0.0
    %881 = vmatpush1.msra.mxu0 0.0
    %882 = vmatprep.subr.mxu0 0.0
    %883 = vmatpush1.msra.mxu0 0.0
    %884 = vmatprep.subr.mxu0 0.0
    %885 = vmatpush1.msra.mxu0 0.0
    %886 = vmatprep.subr.mxu0 0.0
    %887 = vmatpush1.msra.mxu0 0.0
    %888 = vmatprep.subr.mxu0 0.0
    %889 = vmatpush1.msra.mxu0 0.0
    %890 = vmatprep.subr.mxu0 0.0
    %891 = vmatpush1.msra.mxu0 0.0
    %892 = vmatprep.mubr.f32.mxu0 0.0
    %893 = vmatmul.mubr.f32.gmra.mrb[0].mxu0 %v826
    %v894 = vpop.f32.mrb[0].mxu0
    %v895 = vadd.f32 0.0, %v894
    %v896 = vpop.f32.mrb[0].mxu0
    %897 = vdwg.mxu0
    %v898 = vsel %vm540, %v591, 0
    %900 = vmatprep.subr.mxu0 0.0
    %901 = vmatpush1.msra.mxu0 %v556
    %902 = vmatprep.subr.mxu0 0.0
    %903 = vmatpush1.msra.mxu0 0.0
    %904 = vmatprep.subr.mxu0 0.0
    %905 = vmatpush1.msra.mxu0 0.0
    %906 = vmatprep.subr.mxu0 0.0
    %907 = vmatpush1.msra.mxu0 0.0
    %908 = vmatprep.subr.mxu0 0.0
    %909 = vmatpush1.msra.mxu0 0.0
    %910 = vmatprep.subr.mxu0 0.0
    %911 = vmatpush1.msra.mxu0 0.0
    %912 = vmatprep.subr.mxu0 0.0
    %913 = vmatpush1.msra.mxu0 0.0
    %914 = vmatprep.subr.mxu0 0.0
    %915 = vmatpush1.msra.mxu0 0.0
    %916 = vmatprep.subr.mxu0 0.0
    %917 = vmatpush1.msra.mxu0 0.0
    %918 = vmatprep.subr.mxu0 0.0
    %919 = vmatpush1.msra.mxu0 0.0
    %920 = vmatprep.subr.mxu0 0.0
    %921 = vmatpush1.msra.mxu0 0.0
    %922 = vmatprep.subr.mxu0 0.0
    %923 = vmatpush1.msra.mxu0 0.0
    %924 = vmatprep.subr.mxu0 0.0
    %925 = vmatpush1.msra.mxu0 0.0
    %926 = vmatprep.subr.mxu0 0.0
    %927 = vmatpush1.msra.mxu0 0.0
    %928 = vmatprep.subr.mxu0 0.0
    %929 = vmatpush1.msra.mxu0 0.0
    %930 = vmatprep.subr.mxu0 0.0
    %931 = vmatpush1.msra.mxu0 0.0
    %932 = vmatprep.subr.mxu0 0.0
    %933 = vmatpush1.msra.mxu0 0.0
    %934 = vmatprep.subr.mxu0 0.0
    %935 = vmatpush1.msra.mxu0 0.0
    %936 = vmatprep.subr.mxu0 0.0
    %937 = vmatpush1.msra.mxu0 0.0
    %938 = vmatprep.subr.mxu0 0.0
    %939 = vmatpush1.msra.mxu0 0.0
    %940 = vmatprep.subr.mxu0 0.0
    %941 = vmatpush1.msra.mxu0 0.0
    %942 = vmatprep.subr.mxu0 0.0
    %943 = vmatpush1.msra.mxu0 0.0
    %944 = vmatprep.subr.mxu0 0.0
    %945 = vmatpush1.msra.mxu0 0.0
    %946 = vmatprep.subr.mxu0 0.0
    %947 = vmatpush1.msra.mxu0 0.0
    %948 = vmatprep.subr.mxu0 0.0
    %949 = vmatpush1.msra.mxu0 0.0
    %950 = vmatprep.subr.mxu0 0.0
    %951 = vmatpush1.msra.mxu0 0.0
    %952 = vmatprep.subr.mxu0 0.0
    %953 = vmatpush1.msra.mxu0 0.0
    %954 = vmatprep.subr.mxu0 0.0
    %955 = vmatpush1.msra.mxu0 0.0
    %956 = vmatprep.subr.mxu0 0.0
    %957 = vmatpush1.msra.mxu0 0.0
    %958 = vmatprep.subr.mxu0 0.0
    %959 = vmatpush1.msra.mxu0 0.0
    %960 = vmatprep.subr.mxu0 0.0
    %961 = vmatpush1.msra.mxu0 0.0
    %962 = vmatprep.subr.mxu0 0.0
    %963 = vmatpush1.msra.mxu0 0.0
    %964 = vmatprep.mubr.f32.mxu0 0.0
    %965 = vmatmul.mubr.f32.gmra.mrb[0].mxu0 %v898
    %v966 = vpop.f32.mrb[0].mxu0
    %v967 = vadd.f32 0.0, %v966
    %v968 = vpop.f32.mrb[0].mxu0
    %969 = vdwg.mxu0
    %v970 = vsel %vm540, %v605, 0
    %972 = vmatprep.subr.mxu0 0.0
    %973 = vmatpush1.msra.mxu0 %v557
    %974 = vmatprep.subr.mxu0 0.0
    %975 = vmatpush1.msra.mxu0 0.0
    %976 = vmatprep.subr.mxu0 0.0
    %977 = vmatpush1.msra.mxu0 0.0
    %978 = vmatprep.subr.mxu0 0.0
    %979 = vmatpush1.msra.mxu0 0.0
    %980 = vmatprep.subr.mxu0 0.0
    %981 = vmatpush1.msra.mxu0 0.0
    %982 = vmatprep.subr.mxu0 0.0
    %983 = vmatpush1.msra.mxu0 0.0
    %984 = vmatprep.subr.mxu0 0.0
    %985 = vmatpush1.msra.mxu0 0.0
    %986 = vmatprep.subr.mxu0 0.0
    %987 = vmatpush1.msra.mxu0 0.0
    %988 = vmatprep.subr.mxu0 0.0
    %989 = vmatpush1.msra.mxu0 0.0
    %990 = vmatprep.subr.mxu0 0.0
    %991 = vmatpush1.msra.mxu0 0.0
    %992 = vmatprep.subr.mxu0 0.0
    %993 = vmatpush1.msra.mxu0 0.0
    %994 = vmatprep.subr.mxu0 0.0
    %995 = vmatpush1.msra.mxu0 0.0
    %996 = vmatprep.subr.mxu0 0.0
    %997 = vmatpush1.msra.mxu0 0.0
    %998 = vmatprep.subr.mxu0 0.0
    %999 = vmatpush1.msra.mxu0 0.0
    %1000 = vmatprep.subr.mxu0 0.0
    %1001 = vmatpush1.msra.mxu0 0.0
    %1002 = vmatprep.subr.mxu0 0.0
    %1003 = vmatpush1.msra.mxu0 0.0
    %1004 = vmatprep.subr.mxu0 0.0
    %1005 = vmatpush1.msra.mxu0 0.0
    %1006 = vmatprep.subr.mxu0 0.0
    %1007 = vmatpush1.msra.mxu0 0.0
    %1008 = vmatprep.subr.mxu0 0.0
    %1009 = vmatpush1.msra.mxu0 0.0
    %1010 = vmatprep.subr.mxu0 0.0
    %1011 = vmatpush1.msra.mxu0 0.0
    %1012 = vmatprep.subr.mxu0 0.0
    %1013 = vmatpush1.msra.mxu0 0.0
    %1014 = vmatprep.subr.mxu0 0.0
    %1015 = vmatpush1.msra.mxu0 0.0
    %1016 = vmatprep.subr.mxu0 0.0
    %1017 = vmatpush1.msra.mxu0 0.0
    %1018 = vmatprep.subr.mxu0 0.0
    %1019 = vmatpush1.msra.mxu0 0.0
    %1020 = vmatprep.subr.mxu0 0.0
    %1021 = vmatpush1.msra.mxu0 0.0
    %1022 = vmatprep.subr.mxu0 0.0
    %1023 = vmatpush1.msra.mxu0 0.0
    %1024 = vmatprep.subr.mxu0 0.0
    %1025 = vmatpush1.msra.mxu0 0.0
    %1026 = vmatprep.subr.mxu0 0.0
    %1027 = vmatpush1.msra.mxu0 0.0
    %1028 = vmatprep.subr.mxu0 0.0
    %1029 = vmatpush1.msra.mxu0 0.0
    %1030 = vmatprep.subr.mxu0 0.0
    %1031 = vmatpush1.msra.mxu0 0.0
    %1032 = vmatprep.subr.mxu0 0.0
    %1033 = vmatpush1.msra.mxu0 0.0
    %1034 = vmatprep.subr.mxu0 0.0
    %1035 = vmatpush1.msra.mxu0 0.0
    %1036 = vmatprep.mubr.f32.mxu0 0.0
    %1037 = vmatmul.mubr.f32.gmra.mrb[0].mxu0 %v970
    %v1038 = vpop.f32.mrb[0].mxu0
    %v1039 = vadd.f32 0.0, %v1038
    %v1040 = vpop.f32.mrb[0].mxu0
    %1041 = vdwg.mxu0
    %v1042 = vsel %vm540, %v607, 0
    %1044 = vmatprep.subr.mxu0 0.0
    %1045 = vmatpush1.msra.mxu0 %v558
    %1046 = vmatprep.subr.mxu0 0.0
    %1047 = vmatpush1.msra.mxu0 0.0
    %1048 = vmatprep.subr.mxu0 0.0
    %1049 = vmatpush1.msra.mxu0 0.0
    %1050 = vmatprep.subr.mxu0 0.0
    %1051 = vmatpush1.msra.mxu0 0.0
    %1052 = vmatprep.subr.mxu0 0.0
    %1053 = vmatpush1.msra.mxu0 0.0
    %1054 = vmatprep.subr.mxu0 0.0
    %1055 = vmatpush1.msra.mxu0 0.0
    %1056 = vmatprep.subr.mxu0 0.0
    %1057 = vmatpush1.msra.mxu0 0.0
    %1058 = vmatprep.subr.mxu0 0.0
    %1059 = vmatpush1.msra.mxu0 0.0
    %1060 = vmatprep.subr.mxu0 0.0
    %1061 = vmatpush1.msra.mxu0 0.0
    %1062 = vmatprep.subr.mxu0 0.0
    %1063 = vmatpush1.msra.mxu0 0.0
    %1064 = vmatprep.subr.mxu0 0.0
    %1065 = vmatpush1.msra.mxu0 0.0
    %1066 = vmatprep.subr.mxu0 0.0
    %1067 = vmatpush1.msra.mxu0 0.0
    %1068 = vmatprep.subr.mxu0 0.0
    %1069 = vmatpush1.msra.mxu0 0.0
    %1070 = vmatprep.subr.mxu0 0.0
    %1071 = vmatpush1.msra.mxu0 0.0
    %1072 = vmatprep.subr.mxu0 0.0
    %1073 = vmatpush1.msra.mxu0 0.0
    %1074 = vmatprep.subr.mxu0 0.0
    %1075 = vmatpush1.msra.mxu0 0.0
    %1076 = vmatprep.subr.mxu0 0.0
    %1077 = vmatpush1.msra.mxu0 0.0
    %1078 = vmatprep.subr.mxu0 0.0
    %1079 = vmatpush1.msra.mxu0 0.0
    %1080 = vmatprep.subr.mxu0 0.0
    %1081 = vmatpush1.msra.mxu0 0.0
    %1082 = vmatprep.subr.mxu0 0.0
    %1083 = vmatpush1.msra.mxu0 0.0
    %1084 = vmatprep.subr.mxu0 0.0
    %1085 = vmatpush1.msra.mxu0 0.0
    %1086 = vmatprep.subr.mxu0 0.0
    %1087 = vmatpush1.msra.mxu0 0.0
    %1088 = vmatprep.subr.mxu0 0.0
    %1089 = vmatpush1.msra.mxu0 0.0
    %1090 = vmatprep.subr.mxu0 0.0
    %1091 = vmatpush1.msra.mxu0 0.0
    %1092 = vmatprep.subr.mxu0 0.0
    %1093 = vmatpush1.msra.mxu0 0.0
    %1094 = vmatprep.subr.mxu0 0.0
    %1095 = vmatpush1.msra.mxu0 0.0
    %1096 = vmatprep.subr.mxu0 0.0
    %1097 = vmatpush1.msra.mxu0 0.0
    %1098 = vmatprep.subr.mxu0 0.0
    %1099 = vmatpush1.msra.mxu0 0.0
    %1100 = vmatprep.subr.mxu0 0.0
    %1101 = vmatpush1.msra.mxu0 0.0
    %1102 = vmatprep.subr.mxu0 0.0
    %1103 = vmatpush1.msra.mxu0 0.0
    %1104 = vmatprep.subr.mxu0 0.0
    %1105 = vmatpush1.msra.mxu0 0.0
    %1106 = vmatprep.subr.mxu0 0.0
    %1107 = vmatpush1.msra.mxu0 0.0
    %1108 = vmatprep.mubr.f32.mxu0 0.0
    %1109 = vmatmul.mubr.f32.gmra.mrb[0].mxu0 %v1042
    %v1110 = vpop.f32.mrb[0].mxu0
    %v1111 = vadd.f32 0.0, %v1110
    %v1112 = vpop.f32.mrb[0].mxu0
    %1113 = vdwg.mxu0
    %v1114 = vsel %vm540, %v609, 0
    %1116 = vmatprep.subr.mxu0 0.0
    %1117 = vmatpush1.msra.mxu0 %v559
    %1118 = vmatprep.subr.mxu0 0.0
    %1119 = vmatpush1.msra.mxu0 0.0
    %1120 = vmatprep.subr.mxu0 0.0
    %1121 = vmatpush1.msra.mxu0 0.0
    %1122 = vmatprep.subr.mxu0 0.0
    %1123 = vmatpush1.msra.mxu0 0.0
    %1124 = vmatprep.subr.mxu0 0.0
    %1125 = vmatpush1.msra.mxu0 0.0
    %1126 = vmatprep.subr.mxu0 0.0
    %1127 = vmatpush1.msra.mxu0 0.0
    %1128 = vmatprep.subr.mxu0 0.0
    %1129 = vmatpush1.msra.mxu0 0.0
    %1130 = vmatprep.subr.mxu0 0.0
    %1131 = vmatpush1.msra.mxu0 0.0
    %1132 = vmatprep.subr.mxu0 0.0
    %1133 = vmatpush1.msra.mxu0 0.0
    %1134 = vmatprep.subr.mxu0 0.0
    %1135 = vmatpush1.msra.mxu0 0.0
    %1136 = vmatprep.subr.mxu0 0.0
    %1137 = vmatpush1.msra.mxu0 0.0
    %1138 = vmatprep.subr.mxu0 0.0
    %1139 = vmatpush1.msra.mxu0 0.0
    %1140 = vmatprep.subr.mxu0 0.0
    %1141 = vmatpush1.msra.mxu0 0.0
    %1142 = vmatprep.subr.mxu0 0.0
    %1143 = vmatpush1.msra.mxu0 0.0
    %1144 = vmatprep.subr.mxu0 0.0
    %1145 = vmatpush1.msra.mxu0 0.0
    %1146 = vmatprep.subr.mxu0 0.0
    %1147 = vmatpush1.msra.mxu0 0.0
    %1148 = vmatprep.subr.mxu0 0.0
    %1149 = vmatpush1.msra.mxu0 0.0
    %1150 = vmatprep.subr.mxu0 0.0
    %1151 = vmatpush1.msra.mxu0 0.0
    %1152 = vmatprep.subr.mxu0 0.0
    %1153 = vmatpush1.msra.mxu0 0.0
    %1154 = vmatprep.subr.mxu0 0.0
    %1155 = vmatpush1.msra.mxu0 0.0
    %1156 = vmatprep.subr.mxu0 0.0
    %1157 = vmatpush1.msra.mxu0 0.0
    %1158 = vmatprep.subr.mxu0 0.0
    %1159 = vmatpush1.msra.mxu0 0.0
    %1160 = vmatprep.subr.mxu0 0.0
    %1161 = vmatpush1.msra.mxu0 0.0
    %1162 = vmatprep.subr.mxu0 0.0
    %1163 = vmatpush1.msra.mxu0 0.0
    %1164 = vmatprep.subr.mxu0 0.0
    %1165 = vmatpush1.msra.mxu0 0.0
    %1166 = vmatprep.subr.mxu0 0.0
    %1167 = vmatpush1.msra.mxu0 0.0
    %1168 = vmatprep.subr.mxu0 0.0
    %1169 = vmatpush1.msra.mxu0 0.0
    %1170 = vmatprep.subr.mxu0 0.0
    %1171 = vmatpush1.msra.mxu0 0.0
    %1172 = vmatprep.subr.mxu0 0.0
    %1173 = vmatpush1.msra.mxu0 0.0
    %1174 = vmatprep.subr.mxu0 0.0
    %1175 = vmatpush1.msra.mxu0 0.0
    %1176 = vmatprep.subr.mxu0 0.0
    %1177 = vmatpush1.msra.mxu0 0.0
    %1178 = vmatprep.subr.mxu0 0.0
    %1179 = vmatpush1.msra.mxu0 0.0
    %1180 = vmatprep.mubr.f32.mxu0 0.0
    %1181 = vmatmul.mubr.f32.gmra.mrb[0].mxu0 %v1114
    %v1182 = vpop.f32.mrb[0].mxu0
    %v1183 = vadd.f32 0.0, %v1182
    %v1184 = vpop.f32.mrb[0].mxu0
    %1185 = vdwg.mxu0
    %v1186 = vld [vmem:[#allocation15] sm:$0xff]
    %v1187 = vld [vmem:[#allocation15 + $0x8] sm:$0xff]
    %v1188 = vld [vmem:[#allocation15 + $0x10] sm:$0xff]
    %v1189 = vld [vmem:[#allocation15 + $0x18] sm:$0xff]
    %v1190 = vld [vmem:[#allocation15 + $0x20] sm:$0xff]
    %v1191 = vld [vmem:[#allocation15 + $0x28] sm:$0xff]
    %v1192 = vld [vmem:[#allocation15 + $0x30] sm:$0xff]
    %v1193 = vld [vmem:[#allocation15 + $0x38] sm:$0xff]
    %v1194 = vld [vmem:[#allocation15 + $0x40] sm:$0xff]
    %v1195 = vld [vmem:[#allocation15 + $0x48] sm:$0xff]
    %v1196 = vld [vmem:[#allocation15 + $0x50] sm:$0xff]
    %v1197 = vld [vmem:[#allocation15 + $0x58] sm:$0xff]
    %v1198 = vld [vmem:[#allocation15 + $0x60] sm:$0xff]
    %v1199 = vld [vmem:[#allocation15 + $0x68] sm:$0xff]
    %v1200 = vld [vmem:[#allocation15 + $0x70] sm:$0xff]
    %v1201 = vld [vmem:[#allocation15 + $0x78] sm:$0xff]
    %v1202 = vld [vmem:[#allocation15 + $0x80] sm:$0xff]
    %v1203 = vld [vmem:[#allocation15 + $0x88] sm:$0xff]
    %v1204 = vld [vmem:[#allocation15 + $0x90] sm:$0xff]
    %v1205 = vld [vmem:[#allocation15 + $0x98] sm:$0xff]
    %v1206 = vld [vmem:[#allocation15 + $0xa0] sm:$0xff]
    %v1207 = vld [vmem:[#allocation15 + $0xa8] sm:$0xff]
    %v1208 = vld [vmem:[#allocation15 + $0xb0] sm:$0xff]
    %v1209 = vld [vmem:[#allocation15 + $0xb8] sm:$0xff]
    %v1210 = vld [vmem:[#allocation15 + $0xc0] sm:$0xff]
    %v1211 = vld [vmem:[#allocation15 + $0xc8] sm:$0xff]
    %v1212 = vld [vmem:[#allocation15 + $0xd0] sm:$0xff]
    %v1213 = vld [vmem:[#allocation15 + $0xd8] sm:$0xff]
    %v1214 = vld [vmem:[#allocation15 + $0xe0] sm:$0xff]
    %v1215 = vld [vmem:[#allocation15 + $0xe8] sm:$0xff]
    %v1216 = vld [vmem:[#allocation15 + $0xf0] sm:$0xff]
    %v1217 = vld [vmem:[#allocation15 + $0xf8] sm:$0xff]
    %v1218 = vld [vmem:[#allocation15 + $0x100] sm:$0xff]
    %v1219 = vld [vmem:[#allocation15 + $0x108] sm:$0xff]
    %v1220 = vld [vmem:[#allocation15 + $0x110] sm:$0xff]
    %v1221 = vld [vmem:[#allocation15 + $0x118] sm:$0xff]
    %v1222 = vld [vmem:[#allocation15 + $0x120] sm:$0xff]
    %v1223 = vld [vmem:[#allocation15 + $0x128] sm:$0xff]
    %v1224 = vld [vmem:[#allocation15 + $0x130] sm:$0xff]
    %v1225 = vld [vmem:[#allocation15 + $0x138] sm:$0xff]
    %v1226 = vld [vmem:[#allocation15 + $0x140] sm:$0xff]
    %v1227 = vld [vmem:[#allocation15 + $0x148] sm:$0xff]
    %v1228 = vld [vmem:[#allocation15 + $0x150] sm:$0xff]
    %v1229 = vld [vmem:[#allocation15 + $0x158] sm:$0xff]
    %v1230 = vld [vmem:[#allocation15 + $0x160] sm:$0xff]
    %v1231 = vld [vmem:[#allocation15 + $0x168] sm:$0xff]
    %v1232 = vld [vmem:[#allocation15 + $0x170] sm:$0xff]
    %v1233 = vld [vmem:[#allocation15 + $0x178] sm:$0xff]
    %v1242 = vrot.slane %v751, 7
    %v1243 = vsel %vm524, %v1242, %v679
    %v1244 = vrot.slane %v823, 6
    %v1245 = vsel %vm526, %v1244, %v1243
    %v1246 = vrot.slane %v895, 5
    %v1247 = vsel %vm528, %v1246, %v1245
    %v1248 = vrot.slane %v967, 4
    %v1249 = vsel %vm530, %v1248, %v1247
    %v1250 = vrot.slane %v1039, 3
    %v1251 = vsel %vm532, %v1250, %v1249
    %v1252 = vrot.slane %v1111, 2
    %v1253 = vsel %vm534, %v1252, %v1251
    %v1254 = vrot.slane %v1183, 1
    %v1255 = vsel %vm536, %v1254, %v1253
    %v1257 = vld [vmem:[%s10] sm:$0x1]
    %v1259 = vlaneseq
    %v1260 = vshrl.u32 %v1259, 7
    %v1261 = vsub.s32 0, %v1260
    %v1262 = vrot.slane %v1257, %v1261
    %1264 = vmatprep.subr.mxu0 0.0
    %1265 = vmatpush1.msra.mxu0 %v1186
    %1266 = vmatprep.subr.mxu0 0.0
    %1267 = vmatpush1.msra.mxu0 %v1187
    %1268 = vmatprep.subr.mxu0 0.0
    %1269 = vmatpush1.msra.mxu0 %v1188
    %1270 = vmatprep.subr.mxu0 0.0
    %1271 = vmatpush1.msra.mxu0 %v1189
    %1272 = vmatprep.subr.mxu0 0.0
    %1273 = vmatpush1.msra.mxu0 %v1190
    %1274 = vmatprep.subr.mxu0 0.0
    %1275 = vmatpush1.msra.mxu0 %v1191
    %1276 = vmatprep.subr.mxu0 0.0
    %1277 = vmatpush1.msra.mxu0 %v1192
    %1278 = vmatprep.subr.mxu0 0.0
    %1279 = vmatpush1.msra.mxu0 %v1193
    %1280 = vmatprep.subr.mxu0 0.0
    %1281 = vmatpush1.msra.mxu0 %v1194
    %1282 = vmatprep.subr.mxu0 0.0
    %1283 = vmatpush1.msra.mxu0 %v1195
    %1284 = vmatprep.subr.mxu0 0.0
    %1285 = vmatpush1.msra.mxu0 %v1196
    %1286 = vmatprep.subr.mxu0 0.0
    %1287 = vmatpush1.msra.mxu0 %v1197
    %1288 = vmatprep.subr.mxu0 0.0
    %1289 = vmatpush1.msra.mxu0 %v1198
    %1290 = vmatprep.subr.mxu0 0.0
    %1291 = vmatpush1.msra.mxu0 %v1199
    %1292 = vmatprep.subr.mxu0 0.0
    %1293 = vmatpush1.msra.mxu0 %v1200
    %1294 = vmatprep.subr.mxu0 0.0
    %1295 = vmatpush1.msra.mxu0 %v1201
    %1296 = vmatprep.subr.mxu0 0.0
    %1297 = vmatpush1.msra.mxu0 %v1202
    %1298 = vmatprep.subr.mxu0 0.0
    %1299 = vmatpush1.msra.mxu0 %v1203
    %1300 = vmatprep.subr.mxu0 0.0
    %1301 = vmatpush1.msra.mxu0 %v1204
    %1302 = vmatprep.subr.mxu0 0.0
    %1303 = vmatpush1.msra.mxu0 %v1205
    %1304 = vmatprep.subr.mxu0 0.0
    %1305 = vmatpush1.msra.mxu0 %v1206
    %1306 = vmatprep.subr.mxu0 0.0
    %1307 = vmatpush1.msra.mxu0 %v1207
    %1308 = vmatprep.subr.mxu0 0.0
    %1309 = vmatpush1.msra.mxu0 %v1208
    %1310 = vmatprep.subr.mxu0 0.0
    %1311 = vmatpush1.msra.mxu0 %v1209
    %1312 = vmatprep.subr.mxu0 0.0
    %1313 = vmatpush1.msra.mxu0 %v1210
    %1314 = vmatprep.subr.mxu0 0.0
    %1315 = vmatpush1.msra.mxu0 %v1211
    %1316 = vmatprep.subr.mxu0 0.0
    %1317 = vmatpush1.msra.mxu0 %v1212
    %1318 = vmatprep.subr.mxu0 0.0
    %1319 = vmatpush1.msra.mxu0 %v1213
    %1320 = vmatprep.subr.mxu0 0.0
    %1321 = vmatpush1.msra.mxu0 %v1214
    %1322 = vmatprep.subr.mxu0 0.0
    %1323 = vmatpush1.msra.mxu0 %v1215
    %1324 = vmatprep.subr.mxu0 0.0
    %1325 = vmatpush1.msra.mxu0 %v1216
    %1326 = vmatprep.subr.mxu0 0.0
    %1327 = vmatpush1.msra.mxu0 %v1217
    %1328 = vmatprep.mubr.f32.mxu0 %v246
    %1329 = vmatmul.mubr.f32.gmra.mrb[0].mxu0 %v248
    %v1330 = vpop.f32.mrb[0].mxu0
    %v1331 = vadd.f32 %v1262, %v1330
    %v1332 = vpop.f32.mrb[0].mxu0
    %1333 = vdwg.mxu0
    %1334 = vmatprep.subr.mxu0 0.0
    %1335 = vmatpush1.msra.mxu0 %v1218
    %1336 = vmatprep.subr.mxu0 0.0
    %1337 = vmatpush1.msra.mxu0 %v1219
    %1338 = vmatprep.subr.mxu0 0.0
    %1339 = vmatpush1.msra.mxu0 %v1220
    %1340 = vmatprep.subr.mxu0 0.0
    %1341 = vmatpush1.msra.mxu0 %v1221
    %1342 = vmatprep.subr.mxu0 0.0
    %1343 = vmatpush1.msra.mxu0 %v1222
    %1344 = vmatprep.subr.mxu0 0.0
    %1345 = vmatpush1.msra.mxu0 %v1223
    %1346 = vmatprep.subr.mxu0 0.0
    %1347 = vmatpush1.msra.mxu0 %v1224
    %1348 = vmatprep.subr.mxu0 0.0
    %1349 = vmatpush1.msra.mxu0 %v1225
    %1350 = vmatprep.subr.mxu0 0.0
    %1351 = vmatpush1.msra.mxu0 %v1226
    %1352 = vmatprep.subr.mxu0 0.0
    %1353 = vmatpush1.msra.mxu0 %v1227
    %1354 = vmatprep.subr.mxu0 0.0
    %1355 = vmatpush1.msra.mxu0 %v1228
    %1356 = vmatprep.subr.mxu0 0.0
    %1357 = vmatpush1.msra.mxu0 %v1229
    %1358 = vmatprep.subr.mxu0 0.0
    %1359 = vmatpush1.msra.mxu0 %v1230
    %1360 = vmatprep.subr.mxu0 0.0
    %1361 = vmatpush1.msra.mxu0 %v1231
    %1362 = vmatprep.subr.mxu0 0.0
    %1363 = vmatpush1.msra.mxu0 %v1232
    %1364 = vmatprep.subr.mxu0 0.0
    %1365 = vmatpush1.msra.mxu0 %v1233
    %1366 = vmatprep.subr.mxu0 0.0
    %1367 = vmatpush1.msra.mxu0 0.0
    %1368 = vmatprep.subr.mxu0 0.0
    %1369 = vmatpush1.msra.mxu0 0.0
    %1370 = vmatprep.subr.mxu0 0.0
    %1371 = vmatpush1.msra.mxu0 0.0
    %1372 = vmatprep.subr.mxu0 0.0
    %1373 = vmatpush1.msra.mxu0 0.0
    %1374 = vmatprep.subr.mxu0 0.0
    %1375 = vmatpush1.msra.mxu0 0.0
    %1376 = vmatprep.subr.mxu0 0.0
    %1377 = vmatpush1.msra.mxu0 0.0
    %1378 = vmatprep.subr.mxu0 0.0
    %1379 = vmatpush1.msra.mxu0 0.0
    %1380 = vmatprep.subr.mxu0 0.0
    %1381 = vmatpush1.msra.mxu0 0.0
    %1382 = vmatprep.subr.mxu0 0.0
    %1383 = vmatpush1.msra.mxu0 0.0
    %1384 = vmatprep.subr.mxu0 0.0
    %1385 = vmatpush1.msra.mxu0 0.0
    %1386 = vmatprep.subr.mxu0 0.0
    %1387 = vmatpush1.msra.mxu0 0.0
    %1388 = vmatprep.subr.mxu0 0.0
    %1389 = vmatpush1.msra.mxu0 0.0
    %1390 = vmatprep.subr.mxu0 0.0
    %1391 = vmatpush1.msra.mxu0 0.0
    %1392 = vmatprep.subr.mxu0 0.0
    %1393 = vmatpush1.msra.mxu0 0.0
    %1394 = vmatprep.subr.mxu0 0.0
    %1395 = vmatpush1.msra.mxu0 0.0
    %1396 = vmatprep.subr.mxu0 0.0
    %1397 = vmatpush1.msra.mxu0 0.0
    %1398 = vmatprep.mubr.f32.mxu0 0.0
    %1399 = vmatmul.mubr.f32.gmra.mrb[0].mxu0 %v1255
    %v1400 = vpop.f32.mrb[0].mxu0
    %v1401 = vadd.f32 %v1331, %v1400
    %v1402 = vpop.f32.mrb[0].mxu0
    %1403 = vdwg.mxu0
    %v1404 = vxor.u32 %v1401, 2147483648
    %v1405 = vmul.f32 %v1404, 1.442695
    %v1406 = vpow.pop %v1405
    %v1407 = vadd.f32 %v1406, 1.0
    %v1408 = vrcp.pop %v1407
    %v1409 = vmul.f32 1.0, %v1408
    %v1410 = vmul.f32 %v1409, %v1255
    %v1411 = vld [vmem:[#allocation16] sm:$0xff]
    %v1412 = vld [vmem:[#allocation16 + $0x8] sm:$0xff]
    %v1413 = vld [vmem:[#allocation16 + $0x10] sm:$0xff]
    %v1414 = vld [vmem:[#allocation16 + $0x18] sm:$0xff]
    %v1415 = vld [vmem:[#allocation16 + $0x20] sm:$0xff]
    %v1416 = vld [vmem:[#allocation16 + $0x28] sm:$0xff]
    %v1417 = vld [vmem:[#allocation16 + $0x30] sm:$0xff]
    %v1418 = vld [vmem:[#allocation16 + $0x38] sm:$0xff]
    %v1419 = vld [vmem:[#allocation16 + $0x40] sm:$0xff]
    %v1420 = vld [vmem:[#allocation16 + $0x48] sm:$0xff]
    %v1421 = vld [vmem:[#allocation16 + $0x50] sm:$0xff]
    %v1422 = vld [vmem:[#allocation16 + $0x58] sm:$0xff]
    %v1423 = vld [vmem:[#allocation16 + $0x60] sm:$0xff]
    %v1424 = vld [vmem:[#allocation16 + $0x68] sm:$0xff]
    %v1425 = vld [vmem:[#allocation16 + $0x70] sm:$0xff]
    %v1426 = vld [vmem:[#allocation16 + $0x78] sm:$0xff]
    %v1427 = vld [vmem:[#allocation16 + $0x80] sm:$0xff]
    %v1428 = vld [vmem:[#allocation16 + $0x88] sm:$0xff]
    %v1429 = vld [vmem:[#allocation16 + $0x90] sm:$0xff]
    %v1430 = vld [vmem:[#allocation16 + $0x98] sm:$0xff]
    %v1431 = vld [vmem:[#allocation16 + $0xa0] sm:$0xff]
    %v1432 = vld [vmem:[#allocation16 + $0xa8] sm:$0xff]
    %v1433 = vld [vmem:[#allocation16 + $0xb0] sm:$0xff]
    %v1434 = vld [vmem:[#allocation16 + $0xb8] sm:$0xff]
    %v1435 = vld [vmem:[#allocation16 + $0xc0] sm:$0xff]
    %v1436 = vld [vmem:[#allocation16 + $0xc8] sm:$0xff]
    %v1437 = vld [vmem:[#allocation16 + $0xd0] sm:$0xff]
    %v1438 = vld [vmem:[#allocation16 + $0xd8] sm:$0xff]
    %v1439 = vld [vmem:[#allocation16 + $0xe0] sm:$0xff]
    %v1440 = vld [vmem:[#allocation16 + $0xe8] sm:$0xff]
    %v1441 = vld [vmem:[#allocation16 + $0xf0] sm:$0xff]
    %v1442 = vld [vmem:[#allocation16 + $0xf8] sm:$0xff]
    %v1443 = vld [vmem:[#allocation16 + $0x100] sm:$0xff]
    %v1444 = vld [vmem:[#allocation16 + $0x108] sm:$0xff]
    %v1445 = vld [vmem:[#allocation16 + $0x110] sm:$0xff]
    %v1446 = vld [vmem:[#allocation16 + $0x118] sm:$0xff]
    %v1447 = vld [vmem:[#allocation16 + $0x120] sm:$0xff]
    %v1448 = vld [vmem:[#allocation16 + $0x128] sm:$0xff]
    %v1449 = vld [vmem:[#allocation16 + $0x130] sm:$0xff]
    %v1450 = vld [vmem:[#allocation16 + $0x138] sm:$0xff]
    %v1451 = vld [vmem:[#allocation16 + $0x140] sm:$0xff]
    %v1452 = vld [vmem:[#allocation16 + $0x148] sm:$0xff]
    %v1453 = vld [vmem:[#allocation16 + $0x150] sm:$0xff]
    %v1454 = vld [vmem:[#allocation16 + $0x158] sm:$0xff]
    %v1455 = vld [vmem:[#allocation16 + $0x160] sm:$0xff]
    %v1456 = vld [vmem:[#allocation16 + $0x168] sm:$0xff]
    %v1457 = vld [vmem:[#allocation16 + $0x170] sm:$0xff]
    %v1458 = vld [vmem:[#allocation16 + $0x178] sm:$0xff]
    %v1459 = vld [vmem:[#allocation16 + $0x180] sm:$0xff]
    %v1460 = vld [vmem:[#allocation16 + $0x188] sm:$0xff]
    %v1461 = vld [vmem:[#allocation16 + $0x190] sm:$0xff]
    %v1462 = vld [vmem:[#allocation16 + $0x198] sm:$0xff]
    %v1463 = vld [vmem:[#allocation16 + $0x1a0] sm:$0xff]
    %v1464 = vld [vmem:[#allocation16 + $0x1a8] sm:$0xff]
    %v1465 = vld [vmem:[#allocation16 + $0x1b0] sm:$0xff]
    %v1466 = vld [vmem:[#allocation16 + $0x1b8] sm:$0xff]
    %v1467 = vld [vmem:[#allocation16 + $0x1c0] sm:$0xff]
    %v1468 = vld [vmem:[#allocation16 + $0x1c8] sm:$0xff]
    %v1469 = vld [vmem:[#allocation16 + $0x1d0] sm:$0xff]
    %v1470 = vld [vmem:[#allocation16 + $0x1d8] sm:$0xff]
    %v1471 = vld [vmem:[#allocation16 + $0x1e0] sm:$0xff]
    %v1472 = vld [vmem:[#allocation16 + $0x1e8] sm:$0xff]
    %v1473 = vld [vmem:[#allocation16 + $0x1f0] sm:$0xff]
    %v1474 = vld [vmem:[#allocation16 + $0x1f8] sm:$0xff]
    %v1475 = vld [vmem:[#allocation16 + $0x200] sm:$0xff]
    %v1476 = vld [vmem:[#allocation16 + $0x208] sm:$0xff]
    %v1477 = vld [vmem:[#allocation16 + $0x210] sm:$0xff]
    %v1478 = vld [vmem:[#allocation16 + $0x218] sm:$0xff]
    %v1479 = vld [vmem:[#allocation16 + $0x220] sm:$0xff]
    %v1480 = vld [vmem:[#allocation16 + $0x228] sm:$0xff]
    %v1481 = vld [vmem:[#allocation16 + $0x230] sm:$0xff]
    %v1482 = vld [vmem:[#allocation16 + $0x238] sm:$0xff]
    %v1483 = vld [vmem:[#allocation16 + $0x240] sm:$0xff]
    %v1484 = vld [vmem:[#allocation16 + $0x248] sm:$0xff]
    %v1485 = vld [vmem:[#allocation16 + $0x250] sm:$0xff]
    %v1486 = vld [vmem:[#allocation16 + $0x258] sm:$0xff]
    %v1487 = vld [vmem:[#allocation16 + $0x260] sm:$0xff]
    %v1488 = vld [vmem:[#allocation16 + $0x268] sm:$0xff]
    %v1489 = vld [vmem:[#allocation16 + $0x270] sm:$0xff]
    %v1490 = vld [vmem:[#allocation16 + $0x278] sm:$0xff]
    %v1491 = vld [vmem:[#allocation16 + $0x280] sm:$0xff]
    %v1492 = vld [vmem:[#allocation16 + $0x288] sm:$0xff]
    %v1493 = vld [vmem:[#allocation16 + $0x290] sm:$0xff]
    %v1494 = vld [vmem:[#allocation16 + $0x298] sm:$0xff]
    %v1495 = vld [vmem:[#allocation16 + $0x2a0] sm:$0xff]
    %v1496 = vld [vmem:[#allocation16 + $0x2a8] sm:$0xff]
    %v1497 = vld [vmem:[#allocation16 + $0x2b0] sm:$0xff]
    %v1498 = vld [vmem:[#allocation16 + $0x2b8] sm:$0xff]
    %v1499 = vld [vmem:[#allocation16 + $0x2c0] sm:$0xff]
    %v1500 = vld [vmem:[#allocation16 + $0x2c8] sm:$0xff]
    %v1501 = vld [vmem:[#allocation16 + $0x2d0] sm:$0xff]
    %v1502 = vld [vmem:[#allocation16 + $0x2d8] sm:$0xff]
    %v1503 = vld [vmem:[#allocation16 + $0x2e0] sm:$0xff]
    %v1504 = vld [vmem:[#allocation16 + $0x2e8] sm:$0xff]
    %v1505 = vld [vmem:[#allocation16 + $0x2f0] sm:$0xff]
    %v1506 = vld [vmem:[#allocation16 + $0x2f8] sm:$0xff]
    %v1507 = vld [vmem:[#allocation16 + $0x300] sm:$0xff]
    %v1508 = vld [vmem:[#allocation16 + $0x308] sm:$0xff]
    %v1509 = vld [vmem:[#allocation16 + $0x310] sm:$0xff]
    %v1510 = vld [vmem:[#allocation16 + $0x318] sm:$0xff]
    %v1511 = vld [vmem:[#allocation16 + $0x320] sm:$0xff]
    %v1512 = vld [vmem:[#allocation16 + $0x328] sm:$0xff]
    %v1513 = vld [vmem:[#allocation16 + $0x330] sm:$0xff]
    %v1514 = vld [vmem:[#allocation16 + $0x338] sm:$0xff]
    %v1515 = vld [vmem:[#allocation16 + $0x340] sm:$0xff]
    %v1516 = vld [vmem:[#allocation16 + $0x348] sm:$0xff]
    %v1517 = vld [vmem:[#allocation16 + $0x350] sm:$0xff]
    %v1518 = vld [vmem:[#allocation16 + $0x358] sm:$0xff]
    %v1519 = vld [vmem:[#allocation16 + $0x360] sm:$0xff]
    %v1520 = vld [vmem:[#allocation16 + $0x368] sm:$0xff]
    %v1521 = vld [vmem:[#allocation16 + $0x370] sm:$0xff]
    %v1522 = vld [vmem:[#allocation16 + $0x378] sm:$0xff]
    %v1523 = vld [vmem:[#allocation16 + $0x380] sm:$0xff]
    %v1524 = vld [vmem:[#allocation16 + $0x388] sm:$0xff]
    %v1525 = vld [vmem:[#allocation16 + $0x390] sm:$0xff]
    %v1526 = vld [vmem:[#allocation16 + $0x398] sm:$0xff]
    %v1527 = vld [vmem:[#allocation16 + $0x3a0] sm:$0xff]
    %v1528 = vld [vmem:[#allocation16 + $0x3a8] sm:$0xff]
    %v1529 = vld [vmem:[#allocation16 + $0x3b0] sm:$0xff]
    %v1530 = vld [vmem:[#allocation16 + $0x3b8] sm:$0xff]
    %v1531 = vld [vmem:[#allocation16 + $0x3c0] sm:$0xff]
    %v1532 = vld [vmem:[#allocation16 + $0x3c8] sm:$0xff]
    %v1533 = vld [vmem:[#allocation16 + $0x3d0] sm:$0xff]
    %v1534 = vld [vmem:[#allocation16 + $0x3d8] sm:$0xff]
    %v1535 = vld [vmem:[#allocation16 + $0x3e0] sm:$0xff]
    %v1536 = vld [vmem:[#allocation16 + $0x3e8] sm:$0xff]
    %v1537 = vld [vmem:[#allocation16 + $0x3f0] sm:$0xff]
    %v1538 = vld [vmem:[#allocation16 + $0x3f8] sm:$0xff]
    %v1539 = vld [vmem:[#allocation16 + $0x400] sm:$0xff]
    %v1540 = vld [vmem:[#allocation16 + $0x408] sm:$0xff]
    %v1541 = vld [vmem:[#allocation16 + $0x410] sm:$0xff]
    %v1542 = vld [vmem:[#allocation16 + $0x418] sm:$0xff]
    %v1543 = vld [vmem:[#allocation16 + $0x420] sm:$0xff]
    %v1544 = vld [vmem:[#allocation16 + $0x428] sm:$0xff]
    %v1545 = vld [vmem:[#allocation16 + $0x430] sm:$0xff]
    %v1546 = vld [vmem:[#allocation16 + $0x438] sm:$0xff]
    %v1547 = vld [vmem:[#allocation16 + $0x440] sm:$0xff]
    %v1548 = vld [vmem:[#allocation16 + $0x448] sm:$0xff]
    %v1549 = vld [vmem:[#allocation16 + $0x450] sm:$0xff]
    %v1550 = vld [vmem:[#allocation16 + $0x458] sm:$0xff]
    %v1551 = vld [vmem:[#allocation16 + $0x460] sm:$0xff]
    %v1552 = vld [vmem:[#allocation16 + $0x468] sm:$0xff]
    %v1553 = vld [vmem:[#allocation16 + $0x470] sm:$0xff]
    %v1554 = vld [vmem:[#allocation16 + $0x478] sm:$0xff]
    %v1555 = vld [vmem:[#allocation16 + $0x480] sm:$0xff]
    %v1556 = vld [vmem:[#allocation16 + $0x488] sm:$0xff]
    %v1557 = vld [vmem:[#allocation16 + $0x490] sm:$0xff]
    %v1558 = vld [vmem:[#allocation16 + $0x498] sm:$0xff]
    %v1559 = vld [vmem:[#allocation16 + $0x4a0] sm:$0xff]
    %v1560 = vld [vmem:[#allocation16 + $0x4a8] sm:$0xff]
    %v1561 = vld [vmem:[#allocation16 + $0x4b0] sm:$0xff]
    %v1562 = vld [vmem:[#allocation16 + $0x4b8] sm:$0xff]
    %v1563 = vld [vmem:[#allocation16 + $0x4c0] sm:$0xff]
    %v1564 = vld [vmem:[#allocation16 + $0x4c8] sm:$0xff]
    %v1565 = vld [vmem:[#allocation16 + $0x4d0] sm:$0xff]
    %v1566 = vld [vmem:[#allocation16 + $0x4d8] sm:$0xff]
    %v1567 = vld [vmem:[#allocation16 + $0x4e0] sm:$0xff]
    %v1568 = vld [vmem:[#allocation16 + $0x4e8] sm:$0xff]
    %v1569 = vld [vmem:[#allocation16 + $0x4f0] sm:$0xff]
    %v1570 = vld [vmem:[#allocation16 + $0x4f8] sm:$0xff]
    %v1571 = vld [vmem:[#allocation16 + $0x500] sm:$0xff]
    %v1572 = vld [vmem:[#allocation16 + $0x508] sm:$0xff]
    %v1573 = vld [vmem:[#allocation16 + $0x510] sm:$0xff]
    %v1574 = vld [vmem:[#allocation16 + $0x518] sm:$0xff]
    %v1575 = vld [vmem:[#allocation16 + $0x520] sm:$0xff]
    %v1576 = vld [vmem:[#allocation16 + $0x528] sm:$0xff]
    %v1577 = vld [vmem:[#allocation16 + $0x530] sm:$0xff]
    %v1578 = vld [vmem:[#allocation16 + $0x538] sm:$0xff]
    %v1579 = vld [vmem:[#allocation16 + $0x540] sm:$0xff]
    %v1580 = vld [vmem:[#allocation16 + $0x548] sm:$0xff]
    %v1581 = vld [vmem:[#allocation16 + $0x550] sm:$0xff]
    %v1582 = vld [vmem:[#allocation16 + $0x558] sm:$0xff]
    %v1583 = vld [vmem:[#allocation16 + $0x560] sm:$0xff]
    %v1584 = vld [vmem:[#allocation16 + $0x568] sm:$0xff]
    %v1585 = vld [vmem:[#allocation16 + $0x570] sm:$0xff]
    %v1586 = vld [vmem:[#allocation16 + $0x578] sm:$0xff]
    %v1587 = vld [vmem:[#allocation16 + $0x580] sm:$0xff]
    %v1588 = vld [vmem:[#allocation16 + $0x588] sm:$0xff]
    %v1589 = vld [vmem:[#allocation16 + $0x590] sm:$0xff]
    %v1590 = vld [vmem:[#allocation16 + $0x598] sm:$0xff]
    %v1591 = vld [vmem:[#allocation16 + $0x5a0] sm:$0xff]
    %v1592 = vld [vmem:[#allocation16 + $0x5a8] sm:$0xff]
    %v1593 = vld [vmem:[#allocation16 + $0x5b0] sm:$0xff]
    %v1594 = vld [vmem:[#allocation16 + $0x5b8] sm:$0xff]
    %v1595 = vld [vmem:[#allocation16 + $0x5c0] sm:$0xff]
    %v1596 = vld [vmem:[#allocation16 + $0x5c8] sm:$0xff]
    %v1597 = vld [vmem:[#allocation16 + $0x5d0] sm:$0xff]
    %v1598 = vld [vmem:[#allocation16 + $0x5d8] sm:$0xff]
    %v1599 = vld [vmem:[#allocation16 + $0x5e0] sm:$0xff]
    %v1600 = vld [vmem:[#allocation16 + $0x5e8] sm:$0xff]
    %v1601 = vld [vmem:[#allocation16 + $0x5f0] sm:$0xff]
    %v1602 = vld [vmem:[#allocation16 + $0x5f8] sm:$0xff]
    %v1603 = vld [vmem:[#allocation6] sm:$0xff]
    %v1604 = vld [vmem:[#allocation7] sm:$0xff]
    %v1605 = vld [vmem:[%s12] sm:$0xf]
    %v1607 = vlaneseq
    %v1608 = vshrl.u32 %v1607, 7
    %v1609 = vsub.s32 0, %v1608
    %v1610 = vrot.slane %v1605, %v1609
    %v1611 = vlaneseq
    %v1612 = vshrl.u32 %v1611, 7
    %v1613 = vsub.s32 1, %v1612
    %v1614 = vrot.slane %v1605, %v1613
    %v1615 = vlaneseq
    %v1616 = vshrl.u32 %v1615, 7
    %v1617 = vsub.s32 2, %v1616
    %v1618 = vrot.slane %v1605, %v1617
    %v1619 = vlaneseq
    %v1620 = vshrl.u32 %v1619, 7
    %v1621 = vsub.s32 3, %v1620
    %v1622 = vrot.slane %v1605, %v1621
    %1627 = vmatprep.subr.mxu0 %v1412
    %1628 = vmatpush1.msra.mxu0 %v1411
    %1629 = vmatprep.subr.mxu0 %v1416
    %1630 = vmatpush1.msra.mxu0 %v1415
    %1631 = vmatprep.subr.mxu0 %v1420
    %1632 = vmatpush1.msra.mxu0 %v1419
    %1633 = vmatprep.subr.mxu0 %v1424
    %1634 = vmatpush1.msra.mxu0 %v1423
    %1635 = vmatprep.subr.mxu0 %v1428
    %1636 = vmatpush1.msra.mxu0 %v1427
    %1637 = vmatprep.subr.mxu0 %v1432
    %1638 = vmatpush1.msra.mxu0 %v1431
    %1639 = vmatprep.subr.mxu0 %v1436
    %1640 = vmatpush1.msra.mxu0 %v1435
    %1641 = vmatprep.subr.mxu0 %v1440
    %1642 = vmatpush1.msra.mxu0 %v1439
    %1643 = vmatprep.subr.mxu0 %v1444
    %1644 = vmatpush1.msra.mxu0 %v1443
    %1645 = vmatprep.subr.mxu0 %v1448
    %1646 = vmatpush1.msra.mxu0 %v1447
    %1647 = vmatprep.subr.mxu0 %v1452
    %1648 = vmatpush1.msra.mxu0 %v1451
    %1649 = vmatprep.subr.mxu0 %v1456
    %1650 = vmatpush1.msra.mxu0 %v1455
    %1651 = vmatprep.subr.mxu0 %v1460
    %1652 = vmatpush1.msra.mxu0 %v1459
    %1653 = vmatprep.subr.mxu0 %v1464
    %1654 = vmatpush1.msra.mxu0 %v1463
    %1655 = vmatprep.subr.mxu0 %v1468
    %1656 = vmatpush1.msra.mxu0 %v1467
    %1657 = vmatprep.subr.mxu0 %v1472
    %1658 = vmatpush1.msra.mxu0 %v1471
    %1659 = vmatprep.subr.mxu0 %v1476
    %1660 = vmatpush1.msra.mxu0 %v1475
    %1661 = vmatprep.subr.mxu0 %v1480
    %1662 = vmatpush1.msra.mxu0 %v1479
    %1663 = vmatprep.subr.mxu0 %v1484
    %1664 = vmatpush1.msra.mxu0 %v1483
    %1665 = vmatprep.subr.mxu0 %v1488
    %1666 = vmatpush1.msra.mxu0 %v1487
    %1667 = vmatprep.subr.mxu0 %v1492
    %1668 = vmatpush1.msra.mxu0 %v1491
    %1669 = vmatprep.subr.mxu0 %v1496
    %1670 = vmatpush1.msra.mxu0 %v1495
    %1671 = vmatprep.subr.mxu0 %v1500
    %1672 = vmatpush1.msra.mxu0 %v1499
    %1673 = vmatprep.subr.mxu0 %v1504
    %1674 = vmatpush1.msra.mxu0 %v1503
    %1675 = vmatprep.subr.mxu0 %v1508
    %1676 = vmatpush1.msra.mxu0 %v1507
    %1677 = vmatprep.subr.mxu0 %v1512
    %1678 = vmatpush1.msra.mxu0 %v1511
    %1679 = vmatprep.subr.mxu0 %v1516
    %1680 = vmatpush1.msra.mxu0 %v1515
    %1681 = vmatprep.subr.mxu0 %v1520
    %1682 = vmatpush1.msra.mxu0 %v1519
    %1683 = vmatprep.subr.mxu0 %v1524
    %1684 = vmatpush1.msra.mxu0 %v1523
    %1685 = vmatprep.subr.mxu0 %v1528
    %1686 = vmatpush1.msra.mxu0 %v1527
    %1687 = vmatprep.subr.mxu0 %v1532
    %1688 = vmatpush1.msra.mxu0 %v1531
    %1689 = vmatprep.subr.mxu0 %v1536
    %1690 = vmatpush1.msra.mxu0 %v1535
    %1691 = vmatprep.mubr.f32.mxu0 %v1410
    %1692 = vmatmul.mubr.f32.gmra.mrb[0].mxu0 %v246
    %v1693 = vpop.f32.mrb[0].mxu0
    %v1694 = vadd.f32 %v1610, %v1693
    %v1695 = vpop.f32.mrb[0].mxu0
    %v1696 = vadd.f32 %v1614, %v1695
    %1697 = vdwg.mxu0
    %1698 = vmatprep.subr.mxu0 %v1540
    %1699 = vmatpush1.msra.mxu0 %v1539
    %1700 = vmatprep.subr.mxu0 %v1544
    %1701 = vmatpush1.msra.mxu0 %v1543
    %1702 = vmatprep.subr.mxu0 %v1548
    %1703 = vmatpush1.msra.mxu0 %v1547
    %1704 = vmatprep.subr.mxu0 %v1552
    %1705 = vmatpush1.msra.mxu0 %v1551
    %1706 = vmatprep.subr.mxu0 %v1556
    %1707 = vmatpush1.msra.mxu0 %v1555
    %1708 = vmatprep.subr.mxu0 %v1560
    %1709 = vmatpush1.msra.mxu0 %v1559
    %1710 = vmatprep.subr.mxu0 %v1564
    %1711 = vmatpush1.msra.mxu0 %v1563
    %1712 = vmatprep.subr.mxu0 %v1568
    %1713 = vmatpush1.msra.mxu0 %v1567
    %1714 = vmatprep.subr.mxu0 %v1572
    %1715 = vmatpush1.msra.mxu0 %v1571
    %1716 = vmatprep.subr.mxu0 %v1576
    %1717 = vmatpush1.msra.mxu0 %v1575
    %1718 = vmatprep.subr.mxu0 %v1580
    %1719 = vmatpush1.msra.mxu0 %v1579
    %1720 = vmatprep.subr.mxu0 %v1584
    %1721 = vmatpush1.msra.mxu0 %v1583
    %1722 = vmatprep.subr.mxu0 %v1588
    %1723 = vmatpush1.msra.mxu0 %v1587
    %1724 = vmatprep.subr.mxu0 %v1592
    %1725 = vmatpush1.msra.mxu0 %v1591
    %1726 = vmatprep.subr.mxu0 %v1596
    %1727 = vmatpush1.msra.mxu0 %v1595
    %1728 = vmatprep.subr.mxu0 %v1600
    %1729 = vmatpush1.msra.mxu0 %v1599
    %1730 = vmatprep.subr.mxu0 0.0
    %1731 = vmatpush1.msra.mxu0 0.0
    %1732 = vmatprep.subr.mxu0 0.0
    %1733 = vmatpush1.msra.mxu0 0.0
    %1734 = vmatprep.subr.mxu0 0.0
    %1735 = vmatpush1.msra.mxu0 0.0
    %1736 = vmatprep.subr.mxu0 0.0
    %1737 = vmatpush1.msra.mxu0 0.0
    %1738 = vmatprep.subr.mxu0 0.0
    %1739 = vmatpush1.msra.mxu0 0.0
    %1740 = vmatprep.subr.mxu0 0.0
    %1741 = vmatpush1.msra.mxu0 0.0
    %1742 = vmatprep.subr.mxu0 0.0
    %1743 = vmatpush1.msra.mxu0 0.0
    %1744 = vmatprep.subr.mxu0 0.0
    %1745 = vmatpush1.msra.mxu0 0.0
    %1746 = vmatprep.subr.mxu0 0.0
    %1747 = vmatpush1.msra.mxu0 0.0
    %1748 = vmatprep.subr.mxu0 0.0
    %1749 = vmatpush1.msra.mxu0 0.0
    %1750 = vmatprep.subr.mxu0 0.0
    %1751 = vmatpush1.msra.mxu0 0.0
    %1752 = vmatprep.subr.mxu0 0.0
    %1753 = vmatpush1.msra.mxu0 0.0
    %1754 = vmatprep.subr.mxu0 0.0
    %1755 = vmatpush1.msra.mxu0 0.0
    %1756 = vmatprep.subr.mxu0 0.0
    %1757 = vmatpush1.msra.mxu0 0.0
    %1758 = vmatprep.subr.mxu0 0.0
    %1759 = vmatpush1.msra.mxu0 0.0
    %1760 = vmatprep.subr.mxu0 0.0
    %1761 = vmatpush1.msra.mxu0 0.0
    %1762 = vmatprep.mubr.f32.mxu0 0.0
    %1763 = vmatmul.mubr.f32.gmra.mrb[0].mxu0 %v1603
    %v1764 = vpop.f32.mrb[0].mxu0
    %v1765 = vadd.f32 %v1694, %v1764
    %v1766 = vpop.f32.mrb[0].mxu0
    %v1767 = vadd.f32 %v1696, %v1766
    %1768 = vdwg.mxu0
    %1769 = vmatprep.subr.mxu0 %v1414
    %1770 = vmatpush1.msra.mxu0 %v1413
    %1771 = vmatprep.subr.mxu0 %v1418
    %1772 = vmatpush1.msra.mxu0 %v1417
    %1773 = vmatprep.subr.mxu0 %v1422
    %1774 = vmatpush1.msra.mxu0 %v1421
    %1775 = vmatprep.subr.mxu0 %v1426
    %1776 = vmatpush1.msra.mxu0 %v1425
    %1777 = vmatprep.subr.mxu0 %v1430
    %1778 = vmatpush1.msra.mxu0 %v1429
    %1779 = vmatprep.subr.mxu0 %v1434
    %1780 = vmatpush1.msra.mxu0 %v1433
    %1781 = vmatprep.subr.mxu0 %v1438
    %1782 = vmatpush1.msra.mxu0 %v1437
    %1783 = vmatprep.subr.mxu0 %v1442
    %1784 = vmatpush1.msra.mxu0 %v1441
    %1785 = vmatprep.subr.mxu0 %v1446
    %1786 = vmatpush1.msra.mxu0 %v1445
    %1787 = vmatprep.subr.mxu0 %v1450
    %1788 = vmatpush1.msra.mxu0 %v1449
    %1789 = vmatprep.subr.mxu0 %v1454
    %1790 = vmatpush1.msra.mxu0 %v1453
    %1791 = vmatprep.subr.mxu0 %v1458
    %1792 = vmatpush1.msra.mxu0 %v1457
    %1793 = vmatprep.subr.mxu0 %v1462
    %1794 = vmatpush1.msra.mxu0 %v1461
    %1795 = vmatprep.subr.mxu0 %v1466
    %1796 = vmatpush1.msra.mxu0 %v1465
    %1797 = vmatprep.subr.mxu0 %v1470
    %1798 = vmatpush1.msra.mxu0 %v1469
    %1799 = vmatprep.subr.mxu0 %v1474
    %1800 = vmatpush1.msra.mxu0 %v1473
    %1801 = vmatprep.subr.mxu0 %v1478
    %1802 = vmatpush1.msra.mxu0 %v1477
    %1803 = vmatprep.subr.mxu0 %v1482
    %1804 = vmatpush1.msra.mxu0 %v1481
    %1805 = vmatprep.subr.mxu0 %v1486
    %1806 = vmatpush1.msra.mxu0 %v1485
    %1807 = vmatprep.subr.mxu0 %v1490
    %1808 = vmatpush1.msra.mxu0 %v1489
    %1809 = vmatprep.subr.mxu0 %v1494
    %1810 = vmatpush1.msra.mxu0 %v1493
    %1811 = vmatprep.subr.mxu0 %v1498
    %1812 = vmatpush1.msra.mxu0 %v1497
    %1813 = vmatprep.subr.mxu0 %v1502
    %1814 = vmatpush1.msra.mxu0 %v1501
    %1815 = vmatprep.subr.mxu0 %v1506
    %1816 = vmatpush1.msra.mxu0 %v1505
    %1817 = vmatprep.subr.mxu0 %v1510
    %1818 = vmatpush1.msra.mxu0 %v1509
    %1819 = vmatprep.subr.mxu0 %v1514
    %1820 = vmatpush1.msra.mxu0 %v1513
    %1821 = vmatprep.subr.mxu0 %v1518
    %1822 = vmatpush1.msra.mxu0 %v1517
    %1823 = vmatprep.subr.mxu0 %v1522
    %1824 = vmatpush1.msra.mxu0 %v1521
    %1825 = vmatprep.subr.mxu0 %v1526
    %1826 = vmatpush1.msra.mxu0 %v1525
    %1827 = vmatprep.subr.mxu0 %v1530
    %1828 = vmatpush1.msra.mxu0 %v1529
    %1829 = vmatprep.subr.mxu0 %v1534
    %1830 = vmatpush1.msra.mxu0 %v1533
    %1831 = vmatprep.subr.mxu0 %v1538
    %1832 = vmatpush1.msra.mxu0 %v1537
    %1833 = vmatprep.mubr.f32.mxu0 %v1410
    %1834 = vmatmul.mubr.f32.gmra.mrb[0].mxu0 %v246
    %v1835 = vpop.f32.mrb[0].mxu0
    %v1836 = vadd.f32 %v1618, %v1835
    %v1837 = vpop.f32.mrb[0].mxu0
    %v1838 = vadd.f32 %v1622, %v1837
    %1839 = vdwg.mxu0
    %1840 = vmatprep.subr.mxu0 %v1542
    %1841 = vmatpush1.msra.mxu0 %v1541
    %1842 = vmatprep.subr.mxu0 %v1546
    %1843 = vmatpush1.msra.mxu0 %v1545
    %1844 = vmatprep.subr.mxu0 %v1550
    %1845 = vmatpush1.msra.mxu0 %v1549
    %1846 = vmatprep.subr.mxu0 %v1554
    %1847 = vmatpush1.msra.mxu0 %v1553
    %1848 = vmatprep.subr.mxu0 %v1558
    %1849 = vmatpush1.msra.mxu0 %v1557
    %1850 = vmatprep.subr.mxu0 %v1562
    %1851 = vmatpush1.msra.mxu0 %v1561
    %1852 = vmatprep.subr.mxu0 %v1566
    %1853 = vmatpush1.msra.mxu0 %v1565
    %1854 = vmatprep.subr.mxu0 %v1570
    %1855 = vmatpush1.msra.mxu0 %v1569
    %1856 = vmatprep.subr.mxu0 %v1574
    %1857 = vmatpush1.msra.mxu0 %v1573
    %1858 = vmatprep.subr.mxu0 %v1578
    %1859 = vmatpush1.msra.mxu0 %v1577
    %1860 = vmatprep.subr.mxu0 %v1582
    %1861 = vmatpush1.msra.mxu0 %v1581
    %1862 = vmatprep.subr.mxu0 %v1586
    %1863 = vmatpush1.msra.mxu0 %v1585
    %1864 = vmatprep.subr.mxu0 %v1590
    %1865 = vmatpush1.msra.mxu0 %v1589
    %1866 = vmatprep.subr.mxu0 %v1594
    %1867 = vmatpush1.msra.mxu0 %v1593
    %1868 = vmatprep.subr.mxu0 %v1598
    %1869 = vmatpush1.msra.mxu0 %v1597
    %1870 = vmatprep.subr.mxu0 %v1602
    %1871 = vmatpush1.msra.mxu0 %v1601
    %1872 = vmatprep.subr.mxu0 0.0
    %1873 = vmatpush1.msra.mxu0 0.0
    %1874 = vmatprep.subr.mxu0 0.0
    %1875 = vmatpush1.msra.mxu0 0.0
    %1876 = vmatprep.subr.mxu0 0.0
    %1877 = vmatpush1.msra.mxu0 0.0
    %1878 = vmatprep.subr.mxu0 0.0
    %1879 = vmatpush1.msra.mxu0 0.0
    %1880 = vmatprep.subr.mxu0 0.0
    %1881 = vmatpush1.msra.mxu0 0.0
    %1882 = vmatprep.subr.mxu0 0.0
    %1883 = vmatpush1.msra.mxu0 0.0
    %1884 = vmatprep.subr.mxu0 0.0
    %1885 = vmatpush1.msra.mxu0 0.0
    %1886 = vmatprep.subr.mxu0 0.0
    %1887 = vmatpush1.msra.mxu0 0.0
    %1888 = vmatprep.subr.mxu0 0.0
    %1889 = vmatpush1.msra.mxu0 0.0
    %1890 = vmatprep.subr.mxu0 0.0
    %1891 = vmatpush1.msra.mxu0 0.0
    %1892 = vmatprep.subr.mxu0 0.0
    %1893 = vmatpush1.msra.mxu0 0.0
    %1894 = vmatprep.subr.mxu0 0.0
    %1895 = vmatpush1.msra.mxu0 0.0
    %1896 = vmatprep.subr.mxu0 0.0
    %1897 = vmatpush1.msra.mxu0 0.0
    %1898 = vmatprep.subr.mxu0 0.0
    %1899 = vmatpush1.msra.mxu0 0.0
    %1900 = vmatprep.subr.mxu0 0.0
    %1901 = vmatpush1.msra.mxu0 0.0
    %1902 = vmatprep.subr.mxu0 0.0
    %1903 = vmatpush1.msra.mxu0 0.0
    %1904 = vmatprep.mubr.f32.mxu0 0.0
    %1905 = vmatmul.mubr.f32.gmra.mrb[0].mxu0 %v1603
    %v1906 = vpop.f32.mrb[0].mxu0
    %v1907 = vadd.f32 %v1836, %v1906
    %v1908 = vpop.f32.mrb[0].mxu0
    %v1909 = vadd.f32 %v1838, %v1908
    %1910 = vdwg.mxu0
    %v1911 = vxor.u32 %v1765, 2147483648
    %v1912 = vxor.u32 %v1767, 2147483648
    %v1913 = vxor.u32 %v1907, 2147483648
    %v1914 = vmul.f32 %v1911, 1.442695
    %v1915 = vpow.pop %v1914
    %v1916 = vmul.f32 %v1912, 1.442695
    %v1917 = vpow.pop %v1916
    %v1918 = vmul.f32 %v1913, 1.442695
    %v1919 = vpow.pop %v1918
    %v1920 = vadd.f32 %v1915, 1.0
    %v1921 = vadd.f32 %v1917, 1.0
    %v1922 = vadd.f32 %v1919, 1.0
    %v1923 = vrcp.pop %v1920
    %v1924 = vmul.f32 1.0, %v1923
    %v1925 = vrcp.pop %v1921
    %v1926 = vmul.f32 1.0, %v1925
    %v1927 = vrcp.pop %v1922
    %v1928 = vmul.f32 1.0, %v1927
    %v1929 = vtanh.pop %v1909
    %v1930 = vmul.f32 %v1926, %v1604
    %v1931 = vmul.f32 %v1924, %v1929
    %v1932 = vadd.f32 %v1930, %v1931
    %v1933 = vtanh.pop %v1932
    %v1934 = vmul.f32 %v1928, %v1933
    %1935 = vst [vmem:[#allocation20] sm:$0xff] %v1934
    %1936 = vst [vmem:[#allocation22] sm:$0xff] %v1932
    %v1937 = vld [vmem:[#allocation18] sm:$0xff]
    %v1938 = vld [vmem:[#allocation18 + $0x8] sm:$0xff]
    %v1939 = vld [vmem:[#allocation18 + $0x10] sm:$0xff]
    %v1940 = vld [vmem:[#allocation18 + $0x18] sm:$0xff]
    %v1941 = vld [vmem:[#allocation18 + $0x20] sm:$0xff]
    %v1942 = vld [vmem:[#allocation18 + $0x28] sm:$0xff]
    %v1943 = vld [vmem:[#allocation18 + $0x30] sm:$0xff]
    %v1944 = vld [vmem:[#allocation18 + $0x38] sm:$0xff]
    %v1945 = vld [vmem:[#allocation18 + $0x40] sm:$0xff]
    %v1946 = vld [vmem:[#allocation18 + $0x48] sm:$0xff]
    %v1947 = vld [vmem:[#allocation18 + $0x50] sm:$0xff]
    %v1948 = vld [vmem:[#allocation18 + $0x58] sm:$0xff]
    %v1949 = vld [vmem:[#allocation18 + $0x60] sm:$0xff]
    %v1950 = vld [vmem:[#allocation18 + $0x68] sm:$0xff]
    %v1951 = vld [vmem:[#allocation18 + $0x70] sm:$0xff]
    %v1952 = vld [vmem:[#allocation18 + $0x78] sm:$0xff]
    %v1953 = vld [vmem:[#allocation18 + $0x80] sm:$0xff]
    %v1954 = vld [vmem:[#allocation18 + $0x88] sm:$0xff]
    %v1955 = vld [vmem:[#allocation18 + $0x90] sm:$0xff]
    %v1956 = vld [vmem:[#allocation18 + $0x98] sm:$0xff]
    %v1957 = vld [vmem:[#allocation18 + $0xa0] sm:$0xff]
    %v1958 = vld [vmem:[#allocation18 + $0xa8] sm:$0xff]
    %v1959 = vld [vmem:[#allocation18 + $0xb0] sm:$0xff]
    %v1960 = vld [vmem:[#allocation18 + $0xb8] sm:$0xff]
    %v1961 = vld [vmem:[#allocation18 + $0xc0] sm:$0xff]
    %v1962 = vld [vmem:[#allocation18 + $0xc8] sm:$0xff]
    %v1963 = vld [vmem:[#allocation18 + $0xd0] sm:$0xff]
    %v1964 = vld [vmem:[#allocation18 + $0xd8] sm:$0xff]
    %v1965 = vld [vmem:[#allocation18 + $0xe0] sm:$0xff]
    %v1966 = vld [vmem:[#allocation18 + $0xe8] sm:$0xff]
    %v1967 = vld [vmem:[#allocation18 + $0xf0] sm:$0xff]
    %v1968 = vld [vmem:[#allocation18 + $0xf8] sm:$0xff]
    %v1969 = vld [vmem:[#allocation18 + $0x100] sm:$0xff]
    %v1970 = vld [vmem:[#allocation18 + $0x108] sm:$0xff]
    %v1971 = vld [vmem:[#allocation18 + $0x110] sm:$0xff]
    %v1972 = vld [vmem:[#allocation18 + $0x118] sm:$0xff]
    %v1973 = vld [vmem:[#allocation18 + $0x120] sm:$0xff]
    %v1974 = vld [vmem:[#allocation18 + $0x128] sm:$0xff]
    %v1975 = vld [vmem:[#allocation18 + $0x130] sm:$0xff]
    %v1976 = vld [vmem:[#allocation18 + $0x138] sm:$0xff]
    %v1977 = vld [vmem:[#allocation18 + $0x140] sm:$0xff]
    %v1978 = vld [vmem:[#allocation18 + $0x148] sm:$0xff]
    %v1979 = vld [vmem:[#allocation18 + $0x150] sm:$0xff]
    %v1980 = vld [vmem:[#allocation18 + $0x158] sm:$0xff]
    %v1981 = vld [vmem:[#allocation18 + $0x160] sm:$0xff]
    %v1982 = vld [vmem:[#allocation18 + $0x168] sm:$0xff]
    %v1983 = vld [vmem:[#allocation18 + $0x170] sm:$0xff]
    %v1984 = vld [vmem:[#allocation18 + $0x178] sm:$0xff]
    %v1985 = vld [vmem:[#allocation18 + $0x180] sm:$0xff]
    %v1986 = vld [vmem:[#allocation18 + $0x188] sm:$0xff]
    %v1987 = vld [vmem:[#allocation18 + $0x190] sm:$0xff]
    %v1988 = vld [vmem:[#allocation18 + $0x198] sm:$0xff]
    %v1989 = vld [vmem:[#allocation18 + $0x1a0] sm:$0xff]
    %v1990 = vld [vmem:[#allocation18 + $0x1a8] sm:$0xff]
    %v1991 = vld [vmem:[#allocation18 + $0x1b0] sm:$0xff]
    %v1992 = vld [vmem:[#allocation18 + $0x1b8] sm:$0xff]
    %v1993 = vld [vmem:[#allocation18 + $0x1c0] sm:$0xff]
    %v1994 = vld [vmem:[#allocation18 + $0x1c8] sm:$0xff]
    %v1995 = vld [vmem:[#allocation18 + $0x1d0] sm:$0xff]
    %v1996 = vld [vmem:[#allocation18 + $0x1d8] sm:$0xff]
    %v1997 = vld [vmem:[#allocation18 + $0x1e0] sm:$0xff]
    %v1998 = vld [vmem:[#allocation18 + $0x1e8] sm:$0xff]
    %v1999 = vld [vmem:[#allocation18 + $0x1f0] sm:$0xff]
    %v2000 = vld [vmem:[#allocation18 + $0x1f8] sm:$0xff]
    %v2001 = vld [vmem:[#allocation18 + $0x200] sm:$0xff]
    %v2002 = vld [vmem:[#allocation18 + $0x208] sm:$0xff]
    %v2003 = vld [vmem:[#allocation18 + $0x210] sm:$0xff]
    %v2004 = vld [vmem:[#allocation18 + $0x218] sm:$0xff]
    %v2005 = vld [vmem:[#allocation18 + $0x220] sm:$0xff]
    %v2006 = vld [vmem:[#allocation18 + $0x228] sm:$0xff]
    %v2007 = vld [vmem:[#allocation18 + $0x230] sm:$0xff]
    %v2008 = vld [vmem:[#allocation18 + $0x238] sm:$0xff]
    %v2009 = vld [vmem:[#allocation18 + $0x240] sm:$0xff]
    %v2010 = vld [vmem:[#allocation18 + $0x248] sm:$0xff]
    %v2011 = vld [vmem:[#allocation18 + $0x250] sm:$0xff]
    %v2012 = vld [vmem:[#allocation18 + $0x258] sm:$0xff]
    %v2013 = vld [vmem:[#allocation18 + $0x260] sm:$0xff]
    %v2014 = vld [vmem:[#allocation18 + $0x268] sm:$0xff]
    %v2015 = vld [vmem:[#allocation18 + $0x270] sm:$0xff]
    %v2016 = vld [vmem:[#allocation18 + $0x278] sm:$0xff]
    %v2017 = vld [vmem:[#allocation18 + $0x280] sm:$0xff]
    %v2018 = vld [vmem:[#allocation18 + $0x288] sm:$0xff]
    %v2019 = vld [vmem:[#allocation18 + $0x290] sm:$0xff]
    %v2020 = vld [vmem:[#allocation18 + $0x298] sm:$0xff]
    %v2021 = vld [vmem:[#allocation18 + $0x2a0] sm:$0xff]
    %v2022 = vld [vmem:[#allocation18 + $0x2a8] sm:$0xff]
    %v2023 = vld [vmem:[#allocation18 + $0x2b0] sm:$0xff]
    %v2024 = vld [vmem:[#allocation18 + $0x2b8] sm:$0xff]
    %v2025 = vld [vmem:[#allocation18 + $0x2c0] sm:$0xff]
    %v2026 = vld [vmem:[#allocation18 + $0x2c8] sm:$0xff]
    %v2027 = vld [vmem:[#allocation18 + $0x2d0] sm:$0xff]
    %v2028 = vld [vmem:[#allocation18 + $0x2d8] sm:$0xff]
    %v2029 = vld [vmem:[#allocation18 + $0x2e0] sm:$0xff]
    %v2030 = vld [vmem:[#allocation18 + $0x2e8] sm:$0xff]
    %v2031 = vld [vmem:[#allocation18 + $0x2f0] sm:$0xff]
    %v2032 = vld [vmem:[#allocation18 + $0x2f8] sm:$0xff]
    %v2033 = vld [vmem:[#allocation18 + $0x300] sm:$0xff]
    %v2034 = vld [vmem:[#allocation18 + $0x308] sm:$0xff]
    %v2035 = vld [vmem:[#allocation18 + $0x310] sm:$0xff]
    %v2036 = vld [vmem:[#allocation18 + $0x318] sm:$0xff]
    %v2037 = vld [vmem:[#allocation18 + $0x320] sm:$0xff]
    %v2038 = vld [vmem:[#allocation18 + $0x328] sm:$0xff]
    %v2039 = vld [vmem:[#allocation18 + $0x330] sm:$0xff]
    %v2040 = vld [vmem:[#allocation18 + $0x338] sm:$0xff]
    %v2041 = vld [vmem:[#allocation18 + $0x340] sm:$0xff]
    %v2042 = vld [vmem:[#allocation18 + $0x348] sm:$0xff]
    %v2043 = vld [vmem:[#allocation18 + $0x350] sm:$0xff]
    %v2044 = vld [vmem:[#allocation18 + $0x358] sm:$0xff]
    %v2045 = vld [vmem:[#allocation18 + $0x360] sm:$0xff]
    %v2046 = vld [vmem:[#allocation18 + $0x368] sm:$0xff]
    %v2047 = vld [vmem:[#allocation18 + $0x370] sm:$0xff]
    %v2048 = vld [vmem:[#allocation18 + $0x378] sm:$0xff]
    %v2049 = vld [vmem:[#allocation18 + $0x380] sm:$0xff]
    %v2050 = vld [vmem:[#allocation18 + $0x388] sm:$0xff]
    %v2051 = vld [vmem:[#allocation18 + $0x390] sm:$0xff]
    %v2052 = vld [vmem:[#allocation18 + $0x398] sm:$0xff]
    %v2053 = vld [vmem:[#allocation18 + $0x3a0] sm:$0xff]
    %v2054 = vld [vmem:[#allocation18 + $0x3a8] sm:$0xff]
    %v2055 = vld [vmem:[#allocation18 + $0x3b0] sm:$0xff]
    %v2056 = vld [vmem:[#allocation18 + $0x3b8] sm:$0xff]
    %v2057 = vld [vmem:[#allocation18 + $0x3c0] sm:$0xff]
    %v2058 = vld [vmem:[#allocation18 + $0x3c8] sm:$0xff]
    %v2059 = vld [vmem:[#allocation18 + $0x3d0] sm:$0xff]
    %v2060 = vld [vmem:[#allocation18 + $0x3d8] sm:$0xff]
    %v2061 = vld [vmem:[#allocation18 + $0x3e0] sm:$0xff]
    %v2062 = vld [vmem:[#allocation18 + $0x3e8] sm:$0xff]
    %v2063 = vld [vmem:[#allocation18 + $0x3f0] sm:$0xff]
    %v2064 = vld [vmem:[#allocation18 + $0x3f8] sm:$0xff]
    %v2065 = vld [vmem:[%s247] sm:$0xff]
    %s2066 = scalar_lea.vmem [#allocation7], 8
    %v2067 = vld [vmem:[%s2066] sm:$0xff]
    %v2068 = vld [vmem:[%s14] sm:$0xf]
    %v2070 = vlaneseq
    %v2071 = vshrl.u32 %v2070, 7
    %v2072 = vsub.s32 0, %v2071
    %v2073 = vrot.slane %v2068, %v2072
    %v2074 = vlaneseq
    %v2075 = vshrl.u32 %v2074, 7
    %v2076 = vsub.s32 1, %v2075
    %v2077 = vrot.slane %v2068, %v2076
    %v2078 = vlaneseq
    %v2079 = vshrl.u32 %v2078, 7
    %v2080 = vsub.s32 2, %v2079
    %v2081 = vrot.slane %v2068, %v2080
    %v2082 = vlaneseq
    %v2083 = vshrl.u32 %v2082, 7
    %v2084 = vsub.s32 3, %v2083
    %v2085 = vrot.slane %v2068, %v2084
    %2090 = vmatprep.subr.mxu0 %v1938
    %2091 = vmatpush1.msra.mxu0 %v1937
    %2092 = vmatprep.subr.mxu0 %v1942
    %2093 = vmatpush1.msra.mxu0 %v1941
    %2094 = vmatprep.subr.mxu0 %v1946
    %2095 = vmatpush1.msra.mxu0 %v1945
    %2096 = vmatprep.subr.mxu0 %v1950
    %2097 = vmatpush1.msra.mxu0 %v1949
    %2098 = vmatprep.subr.mxu0 %v1954
    %2099 = vmatpush1.msra.mxu0 %v1953
    %2100 = vmatprep.subr.mxu0 %v1958
    %2101 = vmatpush1.msra.mxu0 %v1957
    %2102 = vmatprep.subr.mxu0 %v1962
    %2103 = vmatpush1.msra.mxu0 %v1961
    %2104 = vmatprep.subr.mxu0 %v1966
    %2105 = vmatpush1.msra.mxu0 %v1965
    %2106 = vmatprep.subr.mxu0 %v1970
    %2107 = vmatpush1.msra.mxu0 %v1969
    %2108 = vmatprep.subr.mxu0 %v1974
    %2109 = vmatpush1.msra.mxu0 %v1973
    %2110 = vmatprep.subr.mxu0 %v1978
    %2111 = vmatpush1.msra.mxu0 %v1977
    %2112 = vmatprep.subr.mxu0 %v1982
    %2113 = vmatpush1.msra.mxu0 %v1981
    %2114 = vmatprep.subr.mxu0 %v1986
    %2115 = vmatpush1.msra.mxu0 %v1985
    %2116 = vmatprep.subr.mxu0 %v1990
    %2117 = vmatpush1.msra.mxu0 %v1989
    %2118 = vmatprep.subr.mxu0 %v1994
    %2119 = vmatpush1.msra.mxu0 %v1993
    %2120 = vmatprep.subr.mxu0 %v1998
    %2121 = vmatpush1.msra.mxu0 %v1997
    %2122 = vmatprep.subr.mxu0 %v2002
    %2123 = vmatpush1.msra.mxu0 %v2001
    %2124 = vmatprep.subr.mxu0 %v2006
    %2125 = vmatpush1.msra.mxu0 %v2005
    %2126 = vmatprep.subr.mxu0 %v2010
    %2127 = vmatpush1.msra.mxu0 %v2009
    %2128 = vmatprep.subr.mxu0 %v2014
    %2129 = vmatpush1.msra.mxu0 %v2013
    %2130 = vmatprep.subr.mxu0 %v2018
    %2131 = vmatpush1.msra.mxu0 %v2017
    %2132 = vmatprep.subr.mxu0 %v2022
    %2133 = vmatpush1.msra.mxu0 %v2021
    %2134 = vmatprep.subr.mxu0 %v2026
    %2135 = vmatpush1.msra.mxu0 %v2025
    %2136 = vmatprep.subr.mxu0 %v2030
    %2137 = vmatpush1.msra.mxu0 %v2029
    %2138 = vmatprep.subr.mxu0 %v2034
    %2139 = vmatpush1.msra.mxu0 %v2033
    %2140 = vmatprep.subr.mxu0 %v2038
    %2141 = vmatpush1.msra.mxu0 %v2037
    %2142 = vmatprep.subr.mxu0 %v2042
    %2143 = vmatpush1.msra.mxu0 %v2041
    %2144 = vmatprep.subr.mxu0 %v2046
    %2145 = vmatpush1.msra.mxu0 %v2045
    %2146 = vmatprep.subr.mxu0 %v2050
    %2147 = vmatpush1.msra.mxu0 %v2049
    %2148 = vmatprep.subr.mxu0 %v2054
    %2149 = vmatpush1.msra.mxu0 %v2053
    %2150 = vmatprep.subr.mxu0 %v2058
    %2151 = vmatpush1.msra.mxu0 %v2057
    %2152 = vmatprep.subr.mxu0 %v2062
    %2153 = vmatpush1.msra.mxu0 %v2061
    %2154 = vmatprep.mubr.f32.mxu0 %v2065
    %2155 = vmatmul.mubr.f32.gmra.mrb[0].mxu0 %v1934
    %v2156 = vpop.f32.mrb[0].mxu0
    %v2157 = vadd.f32 %v2073, %v2156
    %v2158 = vpop.f32.mrb[0].mxu0
    %v2159 = vadd.f32 %v2077, %v2158
    %2160 = vdwg.mxu0
    %2161 = vmatprep.subr.mxu0 %v1940
    %2162 = vmatpush1.msra.mxu0 %v1939
    %2163 = vmatprep.subr.mxu0 %v1944
    %2164 = vmatpush1.msra.mxu0 %v1943
    %2165 = vmatprep.subr.mxu0 %v1948
    %2166 = vmatpush1.msra.mxu0 %v1947
    %2167 = vmatprep.subr.mxu0 %v1952
    %2168 = vmatpush1.msra.mxu0 %v1951
    %2169 = vmatprep.subr.mxu0 %v1956
    %2170 = vmatpush1.msra.mxu0 %v1955
    %2171 = vmatprep.subr.mxu0 %v1960
    %2172 = vmatpush1.msra.mxu0 %v1959
    %2173 = vmatprep.subr.mxu0 %v1964
    %2174 = vmatpush1.msra.mxu0 %v1963
    %2175 = vmatprep.subr.mxu0 %v1968
    %2176 = vmatpush1.msra.mxu0 %v1967
    %2177 = vmatprep.subr.mxu0 %v1972
    %2178 = vmatpush1.msra.mxu0 %v1971
    %2179 = vmatprep.subr.mxu0 %v1976
    %2180 = vmatpush1.msra.mxu0 %v1975
    %2181 = vmatprep.subr.mxu0 %v1980
    %2182 = vmatpush1.msra.mxu0 %v1979
    %2183 = vmatprep.subr.mxu0 %v1984
    %2184 = vmatpush1.msra.mxu0 %v1983
    %2185 = vmatprep.subr.mxu0 %v1988
    %2186 = vmatpush1.msra.mxu0 %v1987
    %2187 = vmatprep.subr.mxu0 %v1992
    %2188 = vmatpush1.msra.mxu0 %v1991
    %2189 = vmatprep.subr.mxu0 %v1996
    %2190 = vmatpush1.msra.mxu0 %v1995
    %2191 = vmatprep.subr.mxu0 %v2000
    %2192 = vmatpush1.msra.mxu0 %v1999
    %2193 = vmatprep.subr.mxu0 %v2004
    %2194 = vmatpush1.msra.mxu0 %v2003
    %2195 = vmatprep.subr.mxu0 %v2008
    %2196 = vmatpush1.msra.mxu0 %v2007
    %2197 = vmatprep.subr.mxu0 %v2012
    %2198 = vmatpush1.msra.mxu0 %v2011
    %2199 = vmatprep.subr.mxu0 %v2016
    %2200 = vmatpush1.msra.mxu0 %v2015
    %2201 = vmatprep.subr.mxu0 %v2020
    %2202 = vmatpush1.msra.mxu0 %v2019
    %2203 = vmatprep.subr.mxu0 %v2024
    %2204 = vmatpush1.msra.mxu0 %v2023
    %2205 = vmatprep.subr.mxu0 %v2028
    %2206 = vmatpush1.msra.mxu0 %v2027
    %2207 = vmatprep.subr.mxu0 %v2032
    %2208 = vmatpush1.msra.mxu0 %v2031
    %2209 = vmatprep.subr.mxu0 %v2036
    %2210 = vmatpush1.msra.mxu0 %v2035
    %2211 = vmatprep.subr.mxu0 %v2040
    %2212 = vmatpush1.msra.mxu0 %v2039
    %2213 = vmatprep.subr.mxu0 %v2044
    %2214 = vmatpush1.msra.mxu0 %v2043
    %2215 = vmatprep.subr.mxu0 %v2048
    %2216 = vmatpush1.msra.mxu0 %v2047
    %2217 = vmatprep.subr.mxu0 %v2052
    %2218 = vmatpush1.msra.mxu0 %v2051
    %2219 = vmatprep.subr.mxu0 %v2056
    %2220 = vmatpush1.msra.mxu0 %v2055
    %2221 = vmatprep.subr.mxu0 %v2060
    %2222 = vmatpush1.msra.mxu0 %v2059
    %2223 = vmatprep.subr.mxu0 %v2064
    %2224 = vmatpush1.msra.mxu0 %v2063
    %2225 = vmatprep.mubr.f32.mxu0 %v2065
    %2226 = vmatmul.mubr.f32.gmra.mrb[0].mxu0 %v1934
    %v2227 = vpop.f32.mrb[0].mxu0
    %v2228 = vadd.f32 %v2081, %v2227
    %v2229 = vpop.f32.mrb[0].mxu0
    %v2230 = vadd.f32 %v2085, %v2229
    %2231 = vdwg.mxu0
    %v2232 = vxor.u32 %v2157, 2147483648
    %v2233 = vxor.u32 %v2159, 2147483648
    %v2234 = vxor.u32 %v2228, 2147483648
    %v2235 = vmul.f32 %v2232, 1.442695
    %v2236 = vpow.pop %v2235
    %v2237 = vmul.f32 %v2233, 1.442695
    %v2238 = vpow.pop %v2237
    %v2239 = vmul.f32 %v2234, 1.442695
    %v2240 = vpow.pop %v2239
    %v2241 = vadd.f32 %v2236, 1.0
    %v2242 = vadd.f32 %v2238, 1.0
    %v2243 = vadd.f32 %v2240, 1.0
    %v2244 = vrcp.pop %v2241
    %v2245 = vmul.f32 1.0, %v2244
    %v2246 = vrcp.pop %v2242
    %v2247 = vmul.f32 1.0, %v2246
    %v2248 = vrcp.pop %v2243
    %v2249 = vmul.f32 1.0, %v2248
    %v2250 = vtanh.pop %v2230
    %v2251 = vmul.f32 %v2247, %v2067
    %v2252 = vmul.f32 %v2245, %v2250
    %v2253 = vadd.f32 %v2251, %v2252
    %v2254 = vtanh.pop %v2253
    %v2255 = vmul.f32 %v2249, %v2254
    %s2256 = scalar_lea.vmem [#allocation20], 8
    %2257 = vst [vmem:[%s2256] sm:$0xff] %v2255
    %s2258 = scalar_lea.vmem [#allocation22], 8
    %2259 = vst [vmem:[%s2258] sm:$0xff] %v2253
    %2260 = vst [vmem:[#allocation19] sm:$0xff] %v2255
    // Predicated region
    $region102: #{tpu_custom_call.1} parent=1 // pred_check
      _
    $region103: #{tpu_custom_call.1} parent=1 // pred_check_branch
      %2262 = sbr.rel (0) target = $region105
    $region104: #{tpu_custom_call.1} parent=1 // pred_region
      %s2264 = ssub.s32 128, 128
      %2265 = vsyncadd [#allocation4], %s2264
      %s2267 = sshll.u32 [#allocation19], 4
      %s2268 = int_to_ptr.vmem [resolvable:$true] %s2267
      %2270 = dma.vmem_to_hbm [thread:$0]  %s2268, 128, %s15, [#allocation4]
    $region105: #{tpu_custom_call.1} parent=1 // pred_fallthru
      _
    // Predicated region
    $region106: #{tpu_custom_call.1} parent=1 // pred_check
      _
    $region107: #{tpu_custom_call.1} parent=1 // pred_check_branch
      %2272 = sbr.rel (0) target = $region109
    $region108: #{tpu_custom_call.1} parent=1 // pred_region
      %s2274 = ssub.s32 256, 256
      %2275 = vsyncadd [#allocation21], %s2274
      %s2276 = sshll.u32 [#allocation20], 4
      %s2277 = int_to_ptr.vmem [resolvable:$true] %s2276
      %2282 = dma.vmem_to_hbm [thread:$0]  %s2277, 256, %s16, [#allocation21], 128, 128, 8
    $region109: #{tpu_custom_call.1} parent=1 // pred_fallthru
      _
    // Predicated region
    $region110: #{tpu_custom_call.1} parent=1 // pred_check
      _
    $region111: #{tpu_custom_call.1} parent=1 // pred_check_branch
      %2284 = sbr.rel (0) target = $region113
    $region112: #{tpu_custom_call.1} parent=1 // pred_region
      %s2286 = ssub.s32 256, 256
      %2287 = vsyncadd [#allocation21], %s2286
      %s2288 = sshll.u32 [#allocation22], 4
      %s2289 = int_to_ptr.vmem [resolvable:$true] %s2288
      %2294 = dma.vmem_to_hbm [thread:$0]  %s2289, 256, %s17, [#allocation21], 128, 128, 8
    $region113: #{tpu_custom_call.1} parent=1 // pred_fallthru
      _
    // Predicated region
    $region114: #{tpu_custom_call.1} parent=1 // pred_check
      _
    $region115: #{tpu_custom_call.1} parent=1 // pred_check_branch
      %2296 = sbr.rel (0) target = $region117
    $region116: #{tpu_custom_call.1} parent=1 // pred_region
      %2297 = dma.done [#allocation4], 128
    $region117: #{tpu_custom_call.1} parent=1 // pred_fallthru
      _
    // Predicated region
    $region118: #{tpu_custom_call.1} parent=1 // pred_check
      _
    $region119: #{tpu_custom_call.1} parent=1 // pred_check_branch
      %2299 = sbr.rel (0) target = $region121
    $region120: #{tpu_custom_call.1} parent=1 // pred_region
      %2300 = dma.done [#allocation21], 256
    $region121: #{tpu_custom_call.1} parent=1 // pred_fallthru
      _
    // Predicated region
    $region122: #{tpu_custom_call.1} parent=1 // pred_check
      _
    $region123: #{tpu_custom_call.1} parent=1 // pred_check_branch
      %2302 = sbr.rel (0) target = $region125
    $region124: #{tpu_custom_call.1} parent=1 // pred_region
      %2303 = dma.done [#allocation21], 256
    $region125: #{tpu_custom_call.1} parent=1 // pred_fallthru
      _
    %2304 = vsyncpa [#allocation3], 1
    %2305 = vsyncpa [#allocation8], 1
    %2306 = vsyncpa [#allocation11], 1
    %2307 = vsyncpa [#allocation14], 1
    %2308 = vsyncpa [#allocation17], 1
    %2309 = vsyncpa [#allocation4], 1
    %2310 = vsyncpa [#allocation21], 1
    %2311 = vsyncpa [#allocation5], 1

</llo_original>
